<compile_context>
chip_gen: v5e
topology: v5e:2x2
jax: 0.10.0
libtpu: 0.0.40
codegen_flags: <defaults>
</compile_context>

<pallas_src>
import functools

import jax
import jax.numpy as jnp
from jax.experimental import pallas as pl
from jax.experimental.pallas import tpu as pltpu

FEAT_C = 1792            # EfficientNet-b4 feature channels (= 14 * 128)
HIDDEN = 64              # self.hidden_dim
FC1 = 256
NUM_CLASSES = 10         # numclasses (synthetic choice)
LANE = 128               # lane-dense padding for 64-wide hidden / numclasses logits

# Packed head slab layout (f32, shape (HEAD_ROWS, HEAD_COLS)):
#   rows [0,128)    cols [0,256)   : w1  (64x256, zero-padded rows)
#   rows [128,384)  cols [0,128)   : w2  (256x64, zero-padded cols)
#   rows [128,256)  cols [128,256) : w3  (64xncls, zero-padded)
#   rows [384,392)                 : biases (row 384 b_e2h, 385 b1, 386 b2, 387 b3)
BIAS_ROW = LANE + FC1            # 384
HEAD_ROWS = BIAS_ROW + 8         # 392 (multiple of 8)
HEAD_COLS = FC1                  # 256


def cnn_expert1_kernel(feat_ref, w_e2h_ref, head_ref, hidden_ref, logits_ref,
                       acc_ref, *, inv_s):
    """One grid step = (batch tile b, spatial tile s).

    feat_ref : (tile_b, tile_s, 1792) bf16 NHWC features (C is lane-dense)
    acc_ref  : (tile_b, LANE) f32 running sum over spatial tiles of feat @ w_e2h
    """
    s = pl.program_id(1)

    @pl.when(s == 0)
    def _init():
        acc_ref[...] = jnp.zeros_like(acc_ref)

    tb, ts, c = feat_ref.shape
    # Fused avg-pool + e2h: one bf16 MXU contraction over channels, then a tiny
    # f32 reduction over the spatial rows of the (tb, ts, 128) partial.
    feat2d = feat_ref[...].reshape(tb * ts, c)                    # layout-free (ts % 8 == 0)
    part = jnp.dot(feat2d, w_e2h_ref[...],
                   preferred_element_type=jnp.float32)            # (tb*ts, 128) on MXU
    acc_ref[...] += part.reshape(tb, ts, LANE).sum(axis=1)

    @pl.when(s == pl.num_programs(1) - 1)
    def _finalize():
        bias = head_ref[BIAS_ROW:BIAS_ROW + 8, :]                 # (8, 256), tile-aligned
        b_e2h = bias[0:1, :LANE]
        b1 = bias[1:2, :]
        b2 = bias[2:3, :LANE]
        b3 = bias[3:4, :LANE]
        # mean = sum / S folded in after the matmul; padded cols stay exactly 0.
        hidden = acc_ref[...] * inv_s + b_e2h                     # (tb, 128)
        hidden_ref[...] = hidden.astype(hidden_ref.dtype)
        # fc head: Linear(64,256) -> Linear(256,64) -> ReLU -> Linear(64, ncls),
        # all weights zero-padded to lane width inside the packed slab.
        h = jnp.dot(hidden, head_ref[0:LANE, :],
                    preferred_element_type=jnp.float32) + b1       # (tb, 256)
        h = jnp.dot(h, head_ref[LANE:LANE + FC1, :LANE],
                    preferred_element_type=jnp.float32) + b2       # (tb, 128)
        h = jnp.maximum(h, 0.0)
        logits = jnp.dot(h, head_ref[LANE:2 * LANE, LANE:2 * LANE],
                         preferred_element_type=jnp.float32) + b3  # (tb, 128)
        logits_ref[...] = logits.astype(logits_ref.dtype)


def cnn_expert1_forward(features_nhwc, params, *, num_classes=NUM_CLASSES,
                        tile_b=None, tile_s=None,
                        block_budget_bytes=10 * 1024 * 1024):
    """features_nhwc: (B, H, W, 1792) bf16 -> (hidden (B,64), logits (B,ncls))."""
    B, H, W, C = features_nhwc.shape
    assert C == FEAT_C
    S = H * W
    feat = features_nhwc.reshape(B, S, C)       # free, contiguous (NHWC row-major)

    # --- tile selection -------------------------------------------------------
    if tile_b is None:
        if B <= 8:
            tile_b = B
        elif B <= 16:
            tile_b = 8                           # >= 2 batch tiles -> both v7x TCs
        else:
            tile_b = min(16, 8 * (B // 16))
    tile_b = min(tile_b, B)
    assert tile_b == B or tile_b % 8 == 0        # lane/sublane-aligned output blocks

    if tile_s is None:
        max_s = max(1, block_budget_bytes // (tile_b * C * feat.dtype.itemsize))
        tile_s = S
        if S > max_s:                            # fall back to a spatial reduction axis
            cands = [d for d in range(8, max_s + 1, 8) if S % d == 0]
            tile_s = max(cands) if cands else S
    assert S % tile_s == 0 and (tile_s % 8 == 0 or tile_s == S)

    grid = (pl.cdiv(B, tile_b), S // tile_s)     # (batch tiles, spatial tiles)

    feat_bytes = feat.size * feat.dtype.itemsize
    cost = pl.CostEstimate(
        flops=2 * B * S * C * LANE + 2 * B * (LANE * FC1 + FC1 * LANE + LANE * LANE),
        transcendentals=0,
        bytes_accessed=feat_bytes
        + params["w_e2h"].size * params["w_e2h"].dtype.itemsize
        + params["head"].size * params["head"].dtype.itemsize
        + 2 * B * LANE * 4,
    )

    kernel = functools.partial(cnn_expert1_kernel, inv_s=1.0 / float(S))

    hidden_pad, logits_pad = pl.pallas_call(
        kernel,
        out_shape=(jax.ShapeDtypeStruct((B, LANE), jnp.float32),
                   jax.ShapeDtypeStruct((B, LANE), jnp.float32)),
        grid_spec=pltpu.PrefetchScalarGridSpec(
            num_scalar_prefetch=0,
            grid=grid,
            in_specs=[
                # features: tiled over (batch, spatial); full (lane-dense) channels.
                pl.BlockSpec((tile_b, tile_s, C), lambda b, s: (b, s, 0)),
                # e2h weight (bf16) and packed head slab: constant across the grid.
                pl.BlockSpec((FEAT_C, LANE), lambda b, s: (0, 0)),
                pl.BlockSpec((HEAD_ROWS, HEAD_COLS), lambda b, s: (0, 0)),
            ],
            out_specs=(pl.BlockSpec((tile_b, LANE), lambda b, s: (b, 0)),
                       pl.BlockSpec((tile_b, LANE), lambda b, s: (b, 0))),
            scratch_shapes=[pltpu.VMEM((tile_b, LANE), jnp.float32)],
        ),
        compiler_params=pltpu.CompilerParams(
            dimension_semantics=("parallel", "arbitrary"),
            vmem_limit_bytes=48 * 1024 * 1024,
        ),
        cost_estimate=cost,
    )(feat, params["w_e2h"], params["head"])

    return hidden_pad[:, :HIDDEN], logits_pad[:, :num_classes]


def init_linear(key, fan_in, fan_out):
    """nn.Linear default init: U(-1/sqrt(fan_in), 1/sqrt(fan_in)).
    Weight stored as (fan_in, fan_out) == PyTorch weight.T; bias as (fan_out,)."""
    kw, kb = jax.random.split(key)
    bound = 1.0 / float(fan_in) ** 0.5
    w = jax.random.uniform(kw, (fan_in, fan_out), jnp.float32, -bound, bound)
    b = jax.random.uniform(kb, (fan_out,), jnp.float32, -bound, bound)
    return w, b


def pack_params(w_e2h, b_e2h, w1, b1, w2, b2, w3, b3):
    """Pack the head into one lane-dense f32 slab and the e2h weight into a bf16
    (1792, 128) slab. All padding is zero -> the math is unchanged."""
    ncls = w3.shape[1]
    assert ncls <= LANE
    w_e2h_p = jnp.zeros((FEAT_C, LANE), jnp.float32).at[:, :HIDDEN].set(w_e2h)
    head = jnp.zeros((HEAD_ROWS, HEAD_COLS), jnp.float32)
    head = head.at[0:HIDDEN, 0:FC1].set(w1)
    head = head.at[LANE:LANE + FC1, 0:HIDDEN].set(w2)
    head = head.at[LANE:LANE + HIDDEN, LANE:LANE + ncls].set(w3)
    head = head.at[BIAS_ROW + 0, 0:HIDDEN].set(b_e2h)
    head = head.at[BIAS_ROW + 1, 0:FC1].set(b1)
    head = head.at[BIAS_ROW + 2, 0:HIDDEN].set(b2)
    head = head.at[BIAS_ROW + 3, 0:ncls].set(b3)
    return dict(w_e2h=w_e2h_p.astype(jnp.bfloat16), head=head)


if __name__ == "__main__":
    key = jax.random.PRNGKey(0)
    k_feat, k_e2h, k_fc1, k_fc2, k_fc3 = jax.random.split(key, 5)

    # Small, module-consistent shapes: batch=2, 8x8 spatial, 1792 feature channels.
    # TODO(synk): the frozen EfficientNet-b4 backbone is not implemented; these are
    # the channels-last features it would emit (bf16, standard for TPU inference).
    B, Hf, Wf = 2, 8, 8
    features = jax.random.normal(
        k_feat, (B, Hf, Wf, FEAT_C), jnp.float32).astype(jnp.bfloat16)

    w_e2h, b_e2h = init_linear(k_e2h, FEAT_C, HIDDEN)
    w1, b1 = init_linear(k_fc1, HIDDEN, FC1)
    w2, b2 = init_linear(k_fc2, FC1, HIDDEN)
    w3, b3 = init_linear(k_fc3, HIDDEN, NUM_CLASSES)
    params = pack_params(w_e2h, b_e2h, w1, b1, w2, b2, w3, b3)

    # Default tiling: single fat step per batch tile (spatial grid axis collapses).
    fwd = jax.jit(functools.partial(cnn_expert1_forward, num_classes=NUM_CLASSES))
    hidden, logits = fwd(features, params)
    jax.block_until_ready((hidden, logits))

    # Second config exercising the pipelined spatial-reduction path (grid (1, 2)).
    fwd2 = jax.jit(functools.partial(cnn_expert1_forward, num_classes=NUM_CLASSES,
                                     tile_b=2, tile_s=32))
    hidden2, logits2 = fwd2(features, params)
    jax.block_until_ready((hidden2, logits2))

    # Reference in plain JAX: same bf16 feature values and bf16 e2h weight
    # (matching the kernel's storage), f32 accumulation throughout.
    feat_f32 = features.astype(jnp.float32)
    pooled_ref = jnp.mean(feat_f32, axis=(1, 2))                       # (B, 1792)
    w_e2h_eff = w_e2h.astype(jnp.bfloat16).astype(jnp.float32)
    hidden_exp = pooled_ref @ w_e2h_eff + b_e2h
    h_ref = hidden_exp @ w1 + b1
    h_ref = jnp.maximum(h_ref @ w2 + b2, 0.0)
    logits_exp = h_ref @ w3 + b3

    assert hidden.shape == (B, HIDDEN) and logits.shape == (B, NUM_CLASSES)
    for h_out, l_out in ((hidden, logits), (hidden2, logits2)):
        assert jnp.allclose(h_out, hidden_exp, atol=1e-3, rtol=1e-3)
        assert jnp.allclose(l_out, logits_exp, atol=1e-3, rtol=1e-3)

    print("KERNEL_OK")
</pallas_src>

<mosaic_0001>
module attributes {stable_mosaic.version = 11 : i64} {
  func.func @cnn_expert1_kernel(%arg0: i32, %arg1: i32, %arg2: memref<2x64x1792xbf16, #tpu.memory_space<vmem>>, %arg3: memref<1792x128xbf16, #tpu.memory_space<vmem>>, %arg4: memref<392x256xf32, #tpu.memory_space<vmem>>, %arg5: memref<2x128xf32, #tpu.memory_space<vmem>>, %arg6: memref<2x128xf32, #tpu.memory_space<vmem>>, %arg7: memref<2x128xf32, #tpu.memory_space<vmem>>) attributes {dimension_semantics = [#tpu.dimension_semantics<parallel>, #tpu.dimension_semantics<arbitrary>], iteration_bounds = array<i64: 1, 1>, scalar_prefetch = 0 : i64, scratch_operands = 1 : i64, tpu.core_type = #tpu.core_type<tc>, window_params = [{transform_indices = @transform_0, window_bounds = array<i64: 2, 64, 1792>}, {pipeline_mode = #tpu.pipeline_mode<synchronous>, transform_indices = @transform_1, window_bounds = array<i64: 1792, 128>}, {pipeline_mode = #tpu.pipeline_mode<synchronous>, transform_indices = @transform_2, window_bounds = array<i64: 392, 256>}, {transform_indices = @transform_3, window_bounds = array<i64: 2, 128>}, {transform_indices = @transform_4, window_bounds = array<i64: 2, 128>}]} {
    %c0_i32 = arith.constant 0 : i32
    %0 = arith.cmpi eq, %arg1, %c0_i32 : i32
    %1 = arith.extui %0 : i1 to i32
    %c0_i32_0 = arith.constant 0 : i32
    %2 = arith.cmpi ne, %1, %c0_i32_0 : i32
    scf.if %2 {
      %cst_12 = arith.constant 0.000000e+00 : f32
      %15 = vector.broadcast %cst_12 : f32 to vector<2x128xf32>
      %c0_13 = arith.constant 0 : index
      %c0_14 = arith.constant 0 : index
      %16 = vector.load %arg7[%c0_13, %c0_14] : memref<2x128xf32, #tpu.memory_space<vmem>>, vector<2x128xf32>
      tpu.vector_store %arg7[%c0_13, %c0_14], %15 {strides = array<i32>} : memref<2x128xf32, #tpu.memory_space<vmem>>, vector<2x128xf32>,
    } else {
    }
    %c0 = arith.constant 0 : index
    %c0_1 = arith.constant 0 : index
    %c0_2 = arith.constant 0 : index
    %3 = vector.load %arg2[%c0, %c0_1, %c0_2] : memref<2x64x1792xbf16, #tpu.memory_space<vmem>>, vector<2x64x1792xbf16>
    %4 = vector.shape_cast %3 : vector<2x64x1792xbf16> to vector<128x1792xbf16>
    %c0_3 = arith.constant 0 : index
    %c0_4 = arith.constant 0 : index
    %5 = vector.load %arg3[%c0_3, %c0_4] : memref<1792x128xbf16, #tpu.memory_space<vmem>>, vector<1792x128xbf16>
    %cst = arith.constant dense<0.000000e+00> : vector<128x128xf32>
    %6 = tpu.matmul %4, %5, %cst {dimension_numbers = #tpu.dot_dimension_numbers<[1], [0], [0], [1], [0, 0, 1, 1], [], []>} : vector<128x1792xbf16>, vector<1792x128xbf16>, vector<128x128xf32> -> vector<128x128xf32>
    %c0_5 = arith.constant 0 : index
    %c0_6 = arith.constant 0 : index
    %7 = vector.load %arg7[%c0_5, %c0_6] : memref<2x128xf32, #tpu.memory_space<vmem>>, vector<2x128xf32>
    %8 = vector.shape_cast %6 : vector<128x128xf32> to vector<2x64x128xf32>
    %cst_7 = arith.constant dense<0.000000e+00> : vector<2x128xf32>
    %9 = vector.multi_reduction <add>, %8, %cst_7 [1] : vector<2x64x128xf32> to vector<2x128xf32>
    %10 = arith.addf %7, %9 : vector<2x128xf32>
    %c0_8 = arith.constant 0 : index
    %c0_9 = arith.constant 0 : index
    %11 = vector.load %arg7[%c0_8, %c0_9] : memref<2x128xf32, #tpu.memory_space<vmem>>, vector<2x128xf32>
    tpu.vector_store %arg7[%c0_8, %c0_9], %10 {strides = array<i32>} : memref<2x128xf32, #tpu.memory_space<vmem>>, vector<2x128xf32>,
    %c0_i32_10 = arith.constant 0 : i32
    %12 = arith.cmpi eq, %arg1, %c0_i32_10 : i32
    %13 = arith.extui %12 : i1 to i32
    %c0_i32_11 = arith.constant 0 : i32
    %14 = arith.cmpi ne, %13, %c0_i32_11 : i32
    scf.if %14 {
      %c384 = arith.constant 384 : index
      %c0_12 = arith.constant 0 : index
      %15 = vector.load %arg4[%c384, %c0_12] : memref<392x256xf32, #tpu.memory_space<vmem>>, vector<8x256xf32>
      %16 = vector.extract_strided_slice %15 {offsets = [0, 0], sizes = [1, 128], strides = [1, 1]} : vector<8x256xf32> to vector<1x128xf32>
      %17 = vector.extract_strided_slice %15 {offsets = [1, 0], sizes = [1, 256], strides = [1, 1]} : vector<8x256xf32> to vector<1x256xf32>
      %18 = vector.extract_strided_slice %15 {offsets = [2, 0], sizes = [1, 128], strides = [1, 1]} : vector<8x256xf32> to vector<1x128xf32>
      %19 = vector.extract_strided_slice %15 {offsets = [3, 0], sizes = [1, 128], strides = [1, 1]} : vector<8x256xf32> to vector<1x128xf32>
      %c0_13 = arith.constant 0 : index
      %c0_14 = arith.constant 0 : index
      %20 = vector.load %arg7[%c0_13, %c0_14] : memref<2x128xf32, #tpu.memory_space<vmem>>, vector<2x128xf32>
      %cst_15 = arith.constant 1.562500e-02 : f32
      %21 = vector.broadcast %cst_15 : f32 to vector<2x128xf32>
      %22 = arith.mulf %20, %21 : vector<2x128xf32>
      %23 = vector.broadcast %16 : vector<1x128xf32> to vector<2x128xf32>
      %24 = arith.addf %22, %23 : vector<2x128xf32>
      %c0_16 = arith.constant 0 : index
      %c0_17 = arith.constant 0 : index
      %25 = vector.load %arg5[%c0_16, %c0_17] : memref<2x128xf32, #tpu.memory_space<vmem>>, vector<2x128xf32>
      tpu.vector_store %arg5[%c0_16, %c0_17], %24 {strides = array<i32>} : memref<2x128xf32, #tpu.memory_space<vmem>>, vector<2x128xf32>,
      %c0_18 = arith.constant 0 : index
      %c0_19 = arith.constant 0 : index
      %26 = vector.load %arg4[%c0_18, %c0_19] : memref<392x256xf32, #tpu.memory_space<vmem>>, vector<128x256xf32>
      %cst_20 = arith.constant dense<0.000000e+00> : vector<2x256xf32>
      %27 = tpu.matmul %24, %26, %cst_20 {dimension_numbers = #tpu.dot_dimension_numbers<[1], [0], [0], [1], [0, 0, 1, 1], [], []>} : vector<2x128xf32>, vector<128x256xf32>, vector<2x256xf32> -> vector<2x256xf32>
      %28 = vector.broadcast %17 : vector<1x256xf32> to vector<2x256xf32>
      %29 = arith.addf %27, %28 : vector<2x256xf32>
      %c128 = arith.constant 128 : index
      %c0_21 = arith.constant 0 : index
      %30 = vector.load %arg4[%c128, %c0_21] : memref<392x256xf32, #tpu.memory_space<vmem>>, vector<256x128xf32>
      %cst_22 = arith.constant dense<0.000000e+00> : vector<2x128xf32>
      %31 = tpu.matmul %29, %30, %cst_22 {dimension_numbers = #tpu.dot_dimension_numbers<[1], [0], [0], [1], [0, 0, 1, 1], [], []>} : vector<2x256xf32>, vector<256x128xf32>, vector<2x128xf32> -> vector<2x128xf32>
      %32 = vector.broadcast %18 : vector<1x128xf32> to vector<2x128xf32>
      %33 = arith.addf %31, %32 : vector<2x128xf32>
      %cst_23 = arith.constant 0.000000e+00 : f32
      %34 = vector.broadcast %cst_23 : f32 to vector<2x128xf32>
      %35 = arith.maximumf %33, %34 : vector<2x128xf32>
      %c128_24 = arith.constant 128 : index
      %c128_25 = arith.constant 128 : index
      %36 = vector.load %arg4[%c128_24, %c128_25] : memref<392x256xf32, #tpu.memory_space<vmem>>, vector<128x128xf32>
      %cst_26 = arith.constant dense<0.000000e+00> : vector<2x128xf32>
      %37 = tpu.matmul %35, %36, %cst_26 {dimension_numbers = #tpu.dot_dimension_numbers<[1], [0], [0], [1], [0, 0, 1, 1], [], []>} : vector<2x128xf32>, vector<128x128xf32>, vector<2x128xf32> -> vector<2x128xf32>
      %38 = vector.broadcast %19 : vector<1x128xf32> to vector<2x128xf32>
      %39 = arith.addf %37, %38 : vector<2x128xf32>
      %c0_27 = arith.constant 0 : index
      %c0_28 = arith.constant 0 : index
      %40 = vector.load %arg6[%c0_27, %c0_28] : memref<2x128xf32, #tpu.memory_space<vmem>>, vector<2x128xf32>
      tpu.vector_store %arg6[%c0_27, %c0_28], %39 {strides = array<i32>} : memref<2x128xf32, #tpu.memory_space<vmem>>, vector<2x128xf32>,
    } else {
    }
    return
  }
  func.func @transform_0(%arg0: i32, %arg1: i32) -> (i32, i32, i32) {
    %c0_i32 = arith.constant 0 : i32
    %c0_i32_0 = arith.constant 0 : i32
    return %arg0, %arg1, %c0_i32 : i32, i32, i32
  }
  func.func @transform_1(%arg0: i32, %arg1: i32) -> (i32, i32) {
    %c0_i32 = arith.constant 0 : i32
    %c0_i32_0 = arith.constant 0 : i32
    %c0_i32_1 = arith.constant 0 : i32
    return %c0_i32, %c0_i32_0 : i32, i32
  }
  func.func @transform_2(%arg0: i32, %arg1: i32) -> (i32, i32) {
    %c0_i32 = arith.constant 0 : i32
    %c0_i32_0 = arith.constant 0 : i32
    %c0_i32_1 = arith.constant 0 : i32
    return %c0_i32, %c0_i32_0 : i32, i32
  }
  func.func @transform_3(%arg0: i32, %arg1: i32) -> (i32, i32) {
    %c0_i32 = arith.constant 0 : i32
    %c0_i32_0 = arith.constant 0 : i32
    return %arg0, %c0_i32 : i32, i32
  }
  func.func @transform_4(%arg0: i32, %arg1: i32) -> (i32, i32) {
    %c0_i32 = arith.constant 0 : i32
    %c0_i32_0 = arith.constant 0 : i32
    return %arg0, %c0_i32 : i32, i32
  }
}

</mosaic_0001>

<llo_original>
// kernel: cnn_expert1_forward.1
$region0: #{cnn_expert1_forward.1}
  #allocation0 [shape = 'u32[]', space=smem, size = 0x4, offset = 0x4, fixed_abs, tag = 'smem constant byte address 0x4 - core index']
  #allocation1 [shape = 'u32[72,128]{1,0:T(1,128)}', space=vmem, size = 0x9000, scoped, tag = 'internal scratch']
  #allocation2 [shape = 'f32[2,128]{1,0:T(2,128)}', space=vmem, size = 0x400, scoped, tag = 'scratch operand']
  %s0 = inlined_call_operand.hbm [shape: bf16[2,64,1792], index: 0, kind: input, shape index: {}]
  %s1 = inlined_call_operand.hbm [shape: bf16[1792,128], index: 1, kind: input, shape index: {}]
  %s2 = inlined_call_operand.hbm [shape: f32[392,256], index: 2, kind: input, shape index: {}]
  %s3 = inlined_call_operand.hbm [shape: f32[2,128], index: 3, kind: output, shape index: {0}]
  %s4 = inlined_call_operand.hbm [shape: f32[2,128], index: 4, kind: output, shape index: {1}]
  %5 = xla_tuple %s3, %s4
  %s6 = sld [smem:[#allocation0]]
  $region50: #{cnn_expert1_forward.1} parent=0
    _
  %s8 = ssub.s32 1, %s6
  %s9 = scalar_select 0, %s8, %s6
  $region1: #{cnn_expert1_forward.1} parent=0
    #allocation3 [shape = 'u8[458752]{0}', space=vmem, size = 0x70000, scoped, tag = 'input window, operand 0, single buffered']
    #allocation4 [shape = 's32[1]{0}', space=sflag, size = 0x4, scoped, tag = 'scoped memory for cnn_expert1_forward.1']
    #allocation5 [shape = 's32[1]{0}', space=sflag, size = 0x4, scoped, tag = 'scoped memory for cnn_expert1_forward.1']
    #allocation6 [shape = 'u8[458752]{0}', space=vmem, size = 0x70000, scoped, tag = 'input window, operand 1, single buffered']
    #allocation7 [shape = 's32[1]{0}', space=sflag, size = 0x4, scoped, tag = 'scoped memory for cnn_expert1_forward.1']
    #allocation8 [shape = 'u8[401408]{0}', space=vmem, size = 0x62000, scoped, tag = 'input window, operand 2, single buffered']
    #allocation9 [shape = 'u8[1024]{0}', space=vmem, size = 0x400, scoped, tag = 'output window, operand 0, single buffered']
    #allocation10 [shape = 'u8[1024]{0}', space=vmem, size = 0x400, scoped, tag = 'output window, operand 1, single buffered']
    #allocation11 [shape = 's32[1]{0}', space=sflag, size = 0x4, scoped, tag = 'scoped memory for cnn_expert1_forward.1']
    %10 = vsyncpa [#allocation4], 0
    %11 = vsyncpa [#allocation7], 0
    %12 = vsyncpa [#allocation5], 0
    %13 = vsyncpa [#allocation11], 0
    // Predicated region
    $region2: #{cnn_expert1_forward.1} parent=1 // pred_check
      _
    $region3: #{cnn_expert1_forward.1} parent=1 // pred_check_branch
      %15 = sbr.rel (0) target = $region5
    $region4: #{cnn_expert1_forward.1} parent=1 // pred_region
      %17 = vsyncadd [#allocation4], 0
      %s18 = sshll.u32 %s0, 4
      %s19 = int_to_ptr.hbm [resolvable:$true] %s18
      %s20 = sshll.u32 [#allocation3], 4
      %s21 = int_to_ptr.vmem [resolvable:$true] %s20
      %26 = dma.hbm_to_vmem [thread:$0]  %s19, 14336, %s21, [#allocation4], 896, 896, 56
    $region5: #{cnn_expert1_forward.1} parent=1 // pred_fallthru
      _
    // Predicated region
    $region6: #{cnn_expert1_forward.1} parent=1 // pred_check
      _
    $region7: #{cnn_expert1_forward.1} parent=1 // pred_check_branch
      %28 = sbr.rel (0) target = $region9
    $region8: #{cnn_expert1_forward.1} parent=1 // pred_region
      %30 = vsyncadd [#allocation7], 0
      %s31 = sshll.u32 %s1, 4
      %s32 = int_to_ptr.hbm [resolvable:$true] %s31
      %s33 = sshll.u32 [#allocation6], 4
      %s34 = int_to_ptr.vmem [resolvable:$true] %s33
      %39 = dma.hbm_to_vmem [thread:$0]  %s32, 14336, %s34, [#allocation7], 64, 64, 4
    $region9: #{cnn_expert1_forward.1} parent=1 // pred_fallthru
      _
    // Predicated region
    $region10: #{cnn_expert1_forward.1} parent=1 // pred_check
      _
    $region11: #{cnn_expert1_forward.1} parent=1 // pred_check_branch
      %41 = sbr.rel (0) target = $region13
    $region12: #{cnn_expert1_forward.1} parent=1 // pred_region
      %43 = vsyncadd [#allocation7], 0
      %s44 = sshll.u32 %s2, 4
      %s45 = int_to_ptr.hbm [resolvable:$true] %s44
      %s46 = sshll.u32 [#allocation8], 4
      %s47 = int_to_ptr.vmem [resolvable:$true] %s46
      %52 = dma.hbm_to_vmem [thread:$0]  %s45, 12544, %s47, [#allocation7], 256, 256, 16
    $region13: #{cnn_expert1_forward.1} parent=1 // pred_fallthru
      _
    // Predicated region
    $region14: #{cnn_expert1_forward.1} parent=1 // pred_check
      _
    $region15: #{cnn_expert1_forward.1} parent=1 // pred_check_branch
      %54 = sbr.rel (0) target = $region17
    $region16: #{cnn_expert1_forward.1} parent=1 // pred_region
      %56 = dma.done [#allocation4], 14336
    $region17: #{cnn_expert1_forward.1} parent=1 // pred_fallthru
      _
    // Predicated region
    $region18: #{cnn_expert1_forward.1} parent=1 // pred_check
      _
    $region19: #{cnn_expert1_forward.1} parent=1 // pred_check_branch
      %58 = sbr.rel (0) target = $region21
    $region20: #{cnn_expert1_forward.1} parent=1 // pred_region
      %60 = dma.done [#allocation7], 14336
    $region21: #{cnn_expert1_forward.1} parent=1 // pred_fallthru
      _
    // Predicated region
    $region22: #{cnn_expert1_forward.1} parent=1 // pred_check
      _
    $region23: #{cnn_expert1_forward.1} parent=1 // pred_check_branch
      %62 = sbr.rel (0) target = $region25
    $region24: #{cnn_expert1_forward.1} parent=1 // pred_region
      %64 = dma.done [#allocation7], 12544
    $region25: #{cnn_expert1_forward.1} parent=1 // pred_fallthru
      _
    %p65 = scmp.eq.s32.totalorder 0, 0
    // Predicated region
    $region26: #{cnn_expert1_forward.1} parent=1 // pred_check
      %p66 = pneg %p65
    $region27: #{cnn_expert1_forward.1} parent=1 // pred_check_branch
      %68 = sbr.rel (%p66) target = $region29
    $region28: #{cnn_expert1_forward.1} parent=1 // pred_region
      %69 = vst [vmem:[#allocation2] sm:$0x3] 0.0
    $region29: #{cnn_expert1_forward.1} parent=1 // pred_fallthru
      _
    %v70 = vld [vmem:[#allocation3] sm:$0xff]
    %v71 = vld [vmem:[#allocation3 + $0x8] sm:$0xff]
    %v72 = vld [vmem:[#allocation3 + $0x10] sm:$0xff]
    %v73 = vld [vmem:[#allocation3 + $0x18] sm:$0xff]
    %v74 = vld [vmem:[#allocation3 + $0x20] sm:$0xff]
    %v75 = vld [vmem:[#allocation3 + $0x28] sm:$0xff]
    %v76 = vld [vmem:[#allocation3 + $0x30] sm:$0xff]
    %v77 = vld [vmem:[#allocation3 + $0x38] sm:$0xff]
    %v78 = vld [vmem:[#allocation3 + $0x40] sm:$0xff]
    %v79 = vld [vmem:[#allocation3 + $0x48] sm:$0xff]
    %v80 = vld [vmem:[#allocation3 + $0x50] sm:$0xff]
    %v81 = vld [vmem:[#allocation3 + $0x58] sm:$0xff]
    %v82 = vld [vmem:[#allocation3 + $0x60] sm:$0xff]
    %v83 = vld [vmem:[#allocation3 + $0x68] sm:$0xff]
    %v84 = vld [vmem:[#allocation3 + $0x70] sm:$0xff]
    %v85 = vld [vmem:[#allocation3 + $0x78] sm:$0xff]
    %v86 = vld [vmem:[#allocation3 + $0x80] sm:$0xff]
    %v87 = vld [vmem:[#allocation3 + $0x88] sm:$0xff]
    %v88 = vld [vmem:[#allocation3 + $0x90] sm:$0xff]
    %v89 = vld [vmem:[#allocation3 + $0x98] sm:$0xff]
    %v90 = vld [vmem:[#allocation3 + $0xa0] sm:$0xff]
    %v91 = vld [vmem:[#allocation3 + $0xa8] sm:$0xff]
    %v92 = vld [vmem:[#allocation3 + $0xb0] sm:$0xff]
    %v93 = vld [vmem:[#allocation3 + $0xb8] sm:$0xff]
    %v94 = vld [vmem:[#allocation3 + $0xc0] sm:$0xff]
    %v95 = vld [vmem:[#allocation3 + $0xc8] sm:$0xff]
    %v96 = vld [vmem:[#allocation3 + $0xd0] sm:$0xff]
    %v97 = vld [vmem:[#allocation3 + $0xd8] sm:$0xff]
    %v98 = vld [vmem:[#allocation3 + $0xe0] sm:$0xff]
    %v99 = vld [vmem:[#allocation3 + $0xe8] sm:$0xff]
    %v100 = vld [vmem:[#allocation3 + $0xf0] sm:$0xff]
    %v101 = vld [vmem:[#allocation3 + $0xf8] sm:$0xff]
    %v102 = vld [vmem:[#allocation3 + $0x100] sm:$0xff]
    %v103 = vld [vmem:[#allocation3 + $0x108] sm:$0xff]
    %v104 = vld [vmem:[#allocation3 + $0x110] sm:$0xff]
    %v105 = vld [vmem:[#allocation3 + $0x118] sm:$0xff]
    %v106 = vld [vmem:[#allocation3 + $0x120] sm:$0xff]
    %v107 = vld [vmem:[#allocation3 + $0x128] sm:$0xff]
    %v108 = vld [vmem:[#allocation3 + $0x130] sm:$0xff]
    %v109 = vld [vmem:[#allocation3 + $0x138] sm:$0xff]
    %v110 = vld [vmem:[#allocation3 + $0x140] sm:$0xff]
    %v111 = vld [vmem:[#allocation3 + $0x148] sm:$0xff]
    %v112 = vld [vmem:[#allocation3 + $0x150] sm:$0xff]
    %v113 = vld [vmem:[#allocation3 + $0x158] sm:$0xff]
    %v114 = vld [vmem:[#allocation3 + $0x160] sm:$0xff]
    %v115 = vld [vmem:[#allocation3 + $0x168] sm:$0xff]
    %v116 = vld [vmem:[#allocation3 + $0x170] sm:$0xff]
    %v117 = vld [vmem:[#allocation3 + $0x178] sm:$0xff]
    %v118 = vld [vmem:[#allocation3 + $0x180] sm:$0xff]
    %v119 = vld [vmem:[#allocation3 + $0x188] sm:$0xff]
    %v120 = vld [vmem:[#allocation3 + $0x190] sm:$0xff]
    %v121 = vld [vmem:[#allocation3 + $0x198] sm:$0xff]
    %v122 = vld [vmem:[#allocation3 + $0x1a0] sm:$0xff]
    %v123 = vld [vmem:[#allocation3 + $0x1a8] sm:$0xff]
    %v124 = vld [vmem:[#allocation3 + $0x1b0] sm:$0xff]
    %v125 = vld [vmem:[#allocation3 + $0x1b8] sm:$0xff]
    %v126 = vld [vmem:[#allocation3 + $0x1c0] sm:$0xff]
    %v127 = vld [vmem:[#allocation3 + $0x1c8] sm:$0xff]
    %v128 = vld [vmem:[#allocation3 + $0x1d0] sm:$0xff]
    %v129 = vld [vmem:[#allocation3 + $0x1d8] sm:$0xff]
    %v130 = vld [vmem:[#allocation3 + $0x1e0] sm:$0xff]
    %v131 = vld [vmem:[#allocation3 + $0x1e8] sm:$0xff]
    %v132 = vld [vmem:[#allocation3 + $0x1f0] sm:$0xff]
    %v133 = vld [vmem:[#allocation3 + $0x1f8] sm:$0xff]
    %v134 = vld [vmem:[#allocation3 + $0x200] sm:$0xff]
    %v135 = vld [vmem:[#allocation3 + $0x208] sm:$0xff]
    %v136 = vld [vmem:[#allocation3 + $0x210] sm:$0xff]
    %v137 = vld [vmem:[#allocation3 + $0x218] sm:$0xff]
    %v138 = vld [vmem:[#allocation3 + $0x220] sm:$0xff]
    %v139 = vld [vmem:[#allocation3 + $0x228] sm:$0xff]
    %v140 = vld [vmem:[#allocation3 + $0x230] sm:$0xff]
    %v141 = vld [vmem:[#allocation3 + $0x238] sm:$0xff]
    %v142 = vld [vmem:[#allocation3 + $0x240] sm:$0xff]
    %v143 = vld [vmem:[#allocation3 + $0x248] sm:$0xff]
    %v144 = vld [vmem:[#allocation3 + $0x250] sm:$0xff]
    %v145 = vld [vmem:[#allocation3 + $0x258] sm:$0xff]
    %v146 = vld [vmem:[#allocation3 + $0x260] sm:$0xff]
    %v147 = vld [vmem:[#allocation3 + $0x268] sm:$0xff]
    %v148 = vld [vmem:[#allocation3 + $0x270] sm:$0xff]
    %v149 = vld [vmem:[#allocation3 + $0x278] sm:$0xff]
    %v150 = vld [vmem:[#allocation3 + $0x280] sm:$0xff]
    %v151 = vld [vmem:[#allocation3 + $0x288] sm:$0xff]
    %v152 = vld [vmem:[#allocation3 + $0x290] sm:$0xff]
    %v153 = vld [vmem:[#allocation3 + $0x298] sm:$0xff]
    %v154 = vld [vmem:[#allocation3 + $0x2a0] sm:$0xff]
    %v155 = vld [vmem:[#allocation3 + $0x2a8] sm:$0xff]
    %v156 = vld [vmem:[#allocation3 + $0x2b0] sm:$0xff]
    %v157 = vld [vmem:[#allocation3 + $0x2b8] sm:$0xff]
    %v158 = vld [vmem:[#allocation3 + $0x2c0] sm:$0xff]
    %v159 = vld [vmem:[#allocation3 + $0x2c8] sm:$0xff]
    %v160 = vld [vmem:[#allocation3 + $0x2d0] sm:$0xff]
    %v161 = vld [vmem:[#allocation3 + $0x2d8] sm:$0xff]
    %v162 = vld [vmem:[#allocation3 + $0x2e0] sm:$0xff]
    %v163 = vld [vmem:[#allocation3 + $0x2e8] sm:$0xff]
    %v164 = vld [vmem:[#allocation3 + $0x2f0] sm:$0xff]
    %v165 = vld [vmem:[#allocation3 + $0x2f8] sm:$0xff]
    %v166 = vld [vmem:[#allocation3 + $0x300] sm:$0xff]
    %v167 = vld [vmem:[#allocation3 + $0x308] sm:$0xff]
    %v168 = vld [vmem:[#allocation3 + $0x310] sm:$0xff]
    %v169 = vld [vmem:[#allocation3 + $0x318] sm:$0xff]
    %v170 = vld [vmem:[#allocation3 + $0x320] sm:$0xff]
    %v171 = vld [vmem:[#allocation3 + $0x328] sm:$0xff]
    %v172 = vld [vmem:[#allocation3 + $0x330] sm:$0xff]
    %v173 = vld [vmem:[#allocation3 + $0x338] sm:$0xff]
    %v174 = vld [vmem:[#allocation3 + $0x340] sm:$0xff]
    %v175 = vld [vmem:[#allocation3 + $0x348] sm:$0xff]
    %v176 = vld [vmem:[#allocation3 + $0x350] sm:$0xff]
    %v177 = vld [vmem:[#allocation3 + $0x358] sm:$0xff]
    %v178 = vld [vmem:[#allocation3 + $0x360] sm:$0xff]
    %v179 = vld [vmem:[#allocation3 + $0x368] sm:$0xff]
    %v180 = vld [vmem:[#allocation3 + $0x370] sm:$0xff]
    %v181 = vld [vmem:[#allocation3 + $0x378] sm:$0xff]
    %v182 = vld [vmem:[#allocation6] sm:$0xf]
    %v183 = vld [vmem:[#allocation6 + $0x4] sm:$0xf]
    %v184 = vld [vmem:[#allocation6 + $0x8] sm:$0xf]
    %v185 = vld [vmem:[#allocation6 + $0xc] sm:$0xf]
    %v186 = vld [vmem:[#allocation6 + $0x10] sm:$0xf]
    %v187 = vld [vmem:[#allocation6 + $0x14] sm:$0xf]
    %v188 = vld [vmem:[#allocation6 + $0x18] sm:$0xf]
    %v189 = vld [vmem:[#allocation6 + $0x1c] sm:$0xf]
    %v190 = vld [vmem:[#allocation6 + $0x20] sm:$0xf]
    %v191 = vld [vmem:[#allocation6 + $0x24] sm:$0xf]
    %v192 = vld [vmem:[#allocation6 + $0x28] sm:$0xf]
    %v193 = vld [vmem:[#allocation6 + $0x2c] sm:$0xf]
    %v194 = vld [vmem:[#allocation6 + $0x30] sm:$0xf]
    %v195 = vld [vmem:[#allocation6 + $0x34] sm:$0xf]
    %v196 = vld [vmem:[#allocation6 + $0x38] sm:$0xf]
    %v197 = vld [vmem:[#allocation6 + $0x3c] sm:$0xf]
    %v198 = vld [vmem:[#allocation6 + $0x40] sm:$0xf]
    %v199 = vld [vmem:[#allocation6 + $0x44] sm:$0xf]
    %v200 = vld [vmem:[#allocation6 + $0x48] sm:$0xf]
    %v201 = vld [vmem:[#allocation6 + $0x4c] sm:$0xf]
    %v202 = vld [vmem:[#allocation6 + $0x50] sm:$0xf]
    %v203 = vld [vmem:[#allocation6 + $0x54] sm:$0xf]
    %v204 = vld [vmem:[#allocation6 + $0x58] sm:$0xf]
    %v205 = vld [vmem:[#allocation6 + $0x5c] sm:$0xf]
    %v206 = vld [vmem:[#allocation6 + $0x60] sm:$0xf]
    %v207 = vld [vmem:[#allocation6 + $0x64] sm:$0xf]
    %v208 = vld [vmem:[#allocation6 + $0x68] sm:$0xf]
    %v209 = vld [vmem:[#allocation6 + $0x6c] sm:$0xf]
    %v210 = vld [vmem:[#allocation6 + $0x70] sm:$0xf]
    %v211 = vld [vmem:[#allocation6 + $0x74] sm:$0xf]
    %v212 = vld [vmem:[#allocation6 + $0x78] sm:$0xf]
    %v213 = vld [vmem:[#allocation6 + $0x7c] sm:$0xf]
    %v214 = vld [vmem:[#allocation6 + $0x80] sm:$0xf]
    %v215 = vld [vmem:[#allocation6 + $0x84] sm:$0xf]
    %v216 = vld [vmem:[#allocation6 + $0x88] sm:$0xf]
    %v217 = vld [vmem:[#allocation6 + $0x8c] sm:$0xf]
    %v218 = vld [vmem:[#allocation6 + $0x90] sm:$0xf]
    %v219 = vld [vmem:[#allocation6 + $0x94] sm:$0xf]
    %v220 = vld [vmem:[#allocation6 + $0x98] sm:$0xf]
    %v221 = vld [vmem:[#allocation6 + $0x9c] sm:$0xf]
    %v222 = vld [vmem:[#allocation6 + $0xa0] sm:$0xf]
    %v223 = vld [vmem:[#allocation6 + $0xa4] sm:$0xf]
    %v224 = vld [vmem:[#allocation6 + $0xa8] sm:$0xf]
    %v225 = vld [vmem:[#allocation6 + $0xac] sm:$0xf]
    %v226 = vld [vmem:[#allocation6 + $0xb0] sm:$0xf]
    %v227 = vld [vmem:[#allocation6 + $0xb4] sm:$0xf]
    %v228 = vld [vmem:[#allocation6 + $0xb8] sm:$0xf]
    %v229 = vld [vmem:[#allocation6 + $0xbc] sm:$0xf]
    %v230 = vld [vmem:[#allocation6 + $0xc0] sm:$0xf]
    %v231 = vld [vmem:[#allocation6 + $0xc4] sm:$0xf]
    %v232 = vld [vmem:[#allocation6 + $0xc8] sm:$0xf]
    %v233 = vld [vmem:[#allocation6 + $0xcc] sm:$0xf]
    %v234 = vld [vmem:[#allocation6 + $0xd0] sm:$0xf]
    %v235 = vld [vmem:[#allocation6 + $0xd4] sm:$0xf]
    %v236 = vld [vmem:[#allocation6 + $0xd8] sm:$0xf]
    %v237 = vld [vmem:[#allocation6 + $0xdc] sm:$0xf]
    %v238 = vld [vmem:[#allocation6 + $0xe0] sm:$0xf]
    %v239 = vld [vmem:[#allocation6 + $0xe4] sm:$0xf]
    %v240 = vld [vmem:[#allocation6 + $0xe8] sm:$0xf]
    %v241 = vld [vmem:[#allocation6 + $0xec] sm:$0xf]
    %v242 = vld [vmem:[#allocation6 + $0xf0] sm:$0xf]
    %v243 = vld [vmem:[#allocation6 + $0xf4] sm:$0xf]
    %v244 = vld [vmem:[#allocation6 + $0xf8] sm:$0xf]
    %v245 = vld [vmem:[#allocation6 + $0xfc] sm:$0xf]
    %v246 = vld [vmem:[#allocation6 + $0x100] sm:$0xf]
    %v247 = vld [vmem:[#allocation6 + $0x104] sm:$0xf]
    %v248 = vld [vmem:[#allocation6 + $0x108] sm:$0xf]
    %v249 = vld [vmem:[#allocation6 + $0x10c] sm:$0xf]
    %v250 = vld [vmem:[#allocation6 + $0x110] sm:$0xf]
    %v251 = vld [vmem:[#allocation6 + $0x114] sm:$0xf]
    %v252 = vld [vmem:[#allocation6 + $0x118] sm:$0xf]
    %v253 = vld [vmem:[#allocation6 + $0x11c] sm:$0xf]
    %v254 = vld [vmem:[#allocation6 + $0x120] sm:$0xf]
    %v255 = vld [vmem:[#allocation6 + $0x124] sm:$0xf]
    %v256 = vld [vmem:[#allocation6 + $0x128] sm:$0xf]
    %v257 = vld [vmem:[#allocation6 + $0x12c] sm:$0xf]
    %v258 = vld [vmem:[#allocation6 + $0x130] sm:$0xf]
    %v259 = vld [vmem:[#allocation6 + $0x134] sm:$0xf]
    %v260 = vld [vmem:[#allocation6 + $0x138] sm:$0xf]
    %v261 = vld [vmem:[#allocation6 + $0x13c] sm:$0xf]
    %v262 = vld [vmem:[#allocation6 + $0x140] sm:$0xf]
    %v263 = vld [vmem:[#allocation6 + $0x144] sm:$0xf]
    %v264 = vld [vmem:[#allocation6 + $0x148] sm:$0xf]
    %v265 = vld [vmem:[#allocation6 + $0x14c] sm:$0xf]
    %v266 = vld [vmem:[#allocation6 + $0x150] sm:$0xf]
    %v267 = vld [vmem:[#allocation6 + $0x154] sm:$0xf]
    %v268 = vld [vmem:[#allocation6 + $0x158] sm:$0xf]
    %v269 = vld [vmem:[#allocation6 + $0x15c] sm:$0xf]
    %v270 = vld [vmem:[#allocation6 + $0x160] sm:$0xf]
    %v271 = vld [vmem:[#allocation6 + $0x164] sm:$0xf]
    %v272 = vld [vmem:[#allocation6 + $0x168] sm:$0xf]
    %v273 = vld [vmem:[#allocation6 + $0x16c] sm:$0xf]
    %v274 = vld [vmem:[#allocation6 + $0x170] sm:$0xf]
    %v275 = vld [vmem:[#allocation6 + $0x174] sm:$0xf]
    %v276 = vld [vmem:[#allocation6 + $0x178] sm:$0xf]
    %v277 = vld [vmem:[#allocation6 + $0x17c] sm:$0xf]
    %v278 = vld [vmem:[#allocation6 + $0x180] sm:$0xf]
    %v279 = vld [vmem:[#allocation6 + $0x184] sm:$0xf]
    %v280 = vld [vmem:[#allocation6 + $0x188] sm:$0xf]
    %v281 = vld [vmem:[#allocation6 + $0x18c] sm:$0xf]
    %v282 = vld [vmem:[#allocation6 + $0x190] sm:$0xf]
    %v283 = vld [vmem:[#allocation6 + $0x194] sm:$0xf]
    %v284 = vld [vmem:[#allocation6 + $0x198] sm:$0xf]
    %v285 = vld [vmem:[#allocation6 + $0x19c] sm:$0xf]
    %v286 = vld [vmem:[#allocation6 + $0x1a0] sm:$0xf]
    %v287 = vld [vmem:[#allocation6 + $0x1a4] sm:$0xf]
    %v288 = vld [vmem:[#allocation6 + $0x1a8] sm:$0xf]
    %v289 = vld [vmem:[#allocation6 + $0x1ac] sm:$0xf]
    %v290 = vld [vmem:[#allocation6 + $0x1b0] sm:$0xf]
    %v291 = vld [vmem:[#allocation6 + $0x1b4] sm:$0xf]
    %v292 = vld [vmem:[#allocation6 + $0x1b8] sm:$0xf]
    %v293 = vld [vmem:[#allocation6 + $0x1bc] sm:$0xf]
    %v294 = vld [vmem:[#allocation6 + $0x1c0] sm:$0xf]
    %v295 = vld [vmem:[#allocation6 + $0x1c4] sm:$0xf]
    %v296 = vld [vmem:[#allocation6 + $0x1c8] sm:$0xf]
    %v297 = vld [vmem:[#allocation6 + $0x1cc] sm:$0xf]
    %v298 = vld [vmem:[#allocation6 + $0x1d0] sm:$0xf]
    %v299 = vld [vmem:[#allocation6 + $0x1d4] sm:$0xf]
    %v300 = vld [vmem:[#allocation6 + $0x1d8] sm:$0xf]
    %v301 = vld [vmem:[#allocation6 + $0x1dc] sm:$0xf]
    %v302 = vld [vmem:[#allocation6 + $0x1e0] sm:$0xf]
    %v303 = vld [vmem:[#allocation6 + $0x1e4] sm:$0xf]
    %v304 = vld [vmem:[#allocation6 + $0x1e8] sm:$0xf]
    %v305 = vld [vmem:[#allocation6 + $0x1ec] sm:$0xf]
    %v306 = vld [vmem:[#allocation6 + $0x1f0] sm:$0xf]
    %v307 = vld [vmem:[#allocation6 + $0x1f4] sm:$0xf]
    %v308 = vld [vmem:[#allocation6 + $0x1f8] sm:$0xf]
    %v309 = vld [vmem:[#allocation6 + $0x1fc] sm:$0xf]
    %v310 = vld [vmem:[#allocation6 + $0x200] sm:$0xf]
    %v311 = vld [vmem:[#allocation6 + $0x204] sm:$0xf]
    %v312 = vld [vmem:[#allocation6 + $0x208] sm:$0xf]
    %v313 = vld [vmem:[#allocation6 + $0x20c] sm:$0xf]
    %v314 = vld [vmem:[#allocation6 + $0x210] sm:$0xf]
    %v315 = vld [vmem:[#allocation6 + $0x214] sm:$0xf]
    %v316 = vld [vmem:[#allocation6 + $0x218] sm:$0xf]
    %v317 = vld [vmem:[#allocation6 + $0x21c] sm:$0xf]
    %v318 = vld [vmem:[#allocation6 + $0x220] sm:$0xf]
    %v319 = vld [vmem:[#allocation6 + $0x224] sm:$0xf]
    %v320 = vld [vmem:[#allocation6 + $0x228] sm:$0xf]
    %v321 = vld [vmem:[#allocation6 + $0x22c] sm:$0xf]
    %v322 = vld [vmem:[#allocation6 + $0x230] sm:$0xf]
    %v323 = vld [vmem:[#allocation6 + $0x234] sm:$0xf]
    %v324 = vld [vmem:[#allocation6 + $0x238] sm:$0xf]
    %v325 = vld [vmem:[#allocation6 + $0x23c] sm:$0xf]
    %v326 = vld [vmem:[#allocation6 + $0x240] sm:$0xf]
    %v327 = vld [vmem:[#allocation6 + $0x244] sm:$0xf]
    %v328 = vld [vmem:[#allocation6 + $0x248] sm:$0xf]
    %v329 = vld [vmem:[#allocation6 + $0x24c] sm:$0xf]
    %v330 = vld [vmem:[#allocation6 + $0x250] sm:$0xf]
    %v331 = vld [vmem:[#allocation6 + $0x254] sm:$0xf]
    %v332 = vld [vmem:[#allocation6 + $0x258] sm:$0xf]
    %v333 = vld [vmem:[#allocation6 + $0x25c] sm:$0xf]
    %v334 = vld [vmem:[#allocation6 + $0x260] sm:$0xf]
    %v335 = vld [vmem:[#allocation6 + $0x264] sm:$0xf]
    %v336 = vld [vmem:[#allocation6 + $0x268] sm:$0xf]
    %v337 = vld [vmem:[#allocation6 + $0x26c] sm:$0xf]
    %v338 = vld [vmem:[#allocation6 + $0x270] sm:$0xf]
    %v339 = vld [vmem:[#allocation6 + $0x274] sm:$0xf]
    %v340 = vld [vmem:[#allocation6 + $0x278] sm:$0xf]
    %v341 = vld [vmem:[#allocation6 + $0x27c] sm:$0xf]
    %v342 = vld [vmem:[#allocation6 + $0x280] sm:$0xf]
    %v343 = vld [vmem:[#allocation6 + $0x284] sm:$0xf]
    %v344 = vld [vmem:[#allocation6 + $0x288] sm:$0xf]
    %v345 = vld [vmem:[#allocation6 + $0x28c] sm:$0xf]
    %v346 = vld [vmem:[#allocation6 + $0x290] sm:$0xf]
    %v347 = vld [vmem:[#allocation6 + $0x294] sm:$0xf]
    %v348 = vld [vmem:[#allocation6 + $0x298] sm:$0xf]
    %v349 = vld [vmem:[#allocation6 + $0x29c] sm:$0xf]
    %v350 = vld [vmem:[#allocation6 + $0x2a0] sm:$0xf]
    %v351 = vld [vmem:[#allocation6 + $0x2a4] sm:$0xf]
    %v352 = vld [vmem:[#allocation6 + $0x2a8] sm:$0xf]
    %v353 = vld [vmem:[#allocation6 + $0x2ac] sm:$0xf]
    %v354 = vld [vmem:[#allocation6 + $0x2b0] sm:$0xf]
    %v355 = vld [vmem:[#allocation6 + $0x2b4] sm:$0xf]
    %v356 = vld [vmem:[#allocation6 + $0x2b8] sm:$0xf]
    %v357 = vld [vmem:[#allocation6 + $0x2bc] sm:$0xf]
    %v358 = vld [vmem:[#allocation6 + $0x2c0] sm:$0xf]
    %v359 = vld [vmem:[#allocation6 + $0x2c4] sm:$0xf]
    %v360 = vld [vmem:[#allocation6 + $0x2c8] sm:$0xf]
    %v361 = vld [vmem:[#allocation6 + $0x2cc] sm:$0xf]
    %v362 = vld [vmem:[#allocation6 + $0x2d0] sm:$0xf]
    %v363 = vld [vmem:[#allocation6 + $0x2d4] sm:$0xf]
    %v364 = vld [vmem:[#allocation6 + $0x2d8] sm:$0xf]
    %v365 = vld [vmem:[#allocation6 + $0x2dc] sm:$0xf]
    %v366 = vld [vmem:[#allocation6 + $0x2e0] sm:$0xf]
    %v367 = vld [vmem:[#allocation6 + $0x2e4] sm:$0xf]
    %v368 = vld [vmem:[#allocation6 + $0x2e8] sm:$0xf]
    %v369 = vld [vmem:[#allocation6 + $0x2ec] sm:$0xf]
    %v370 = vld [vmem:[#allocation6 + $0x2f0] sm:$0xf]
    %v371 = vld [vmem:[#allocation6 + $0x2f4] sm:$0xf]
    %v372 = vld [vmem:[#allocation6 + $0x2f8] sm:$0xf]
    %v373 = vld [vmem:[#allocation6 + $0x2fc] sm:$0xf]
    %v374 = vld [vmem:[#allocation6 + $0x300] sm:$0xf]
    %v375 = vld [vmem:[#allocation6 + $0x304] sm:$0xf]
    %v376 = vld [vmem:[#allocation6 + $0x308] sm:$0xf]
    %v377 = vld [vmem:[#allocation6 + $0x30c] sm:$0xf]
    %v378 = vld [vmem:[#allocation6 + $0x310] sm:$0xf]
    %v379 = vld [vmem:[#allocation6 + $0x314] sm:$0xf]
    %v380 = vld [vmem:[#allocation6 + $0x318] sm:$0xf]
    %v381 = vld [vmem:[#allocation6 + $0x31c] sm:$0xf]
    %v382 = vld [vmem:[#allocation6 + $0x320] sm:$0xf]
    %v383 = vld [vmem:[#allocation6 + $0x324] sm:$0xf]
    %v384 = vld [vmem:[#allocation6 + $0x328] sm:$0xf]
    %v385 = vld [vmem:[#allocation6 + $0x32c] sm:$0xf]
    %v386 = vld [vmem:[#allocation6 + $0x330] sm:$0xf]
    %v387 = vld [vmem:[#allocation6 + $0x334] sm:$0xf]
    %v388 = vld [vmem:[#allocation6 + $0x338] sm:$0xf]
    %v389 = vld [vmem:[#allocation6 + $0x33c] sm:$0xf]
    %v390 = vld [vmem:[#allocation6 + $0x340] sm:$0xf]
    %v391 = vld [vmem:[#allocation6 + $0x344] sm:$0xf]
    %v392 = vld [vmem:[#allocation6 + $0x348] sm:$0xf]
    %v393 = vld [vmem:[#allocation6 + $0x34c] sm:$0xf]
    %v394 = vld [vmem:[#allocation6 + $0x350] sm:$0xf]
    %v395 = vld [vmem:[#allocation6 + $0x354] sm:$0xf]
    %v396 = vld [vmem:[#allocation6 + $0x358] sm:$0xf]
    %v397 = vld [vmem:[#allocation6 + $0x35c] sm:$0xf]
    %v398 = vld [vmem:[#allocation6 + $0x360] sm:$0xf]
    %v399 = vld [vmem:[#allocation6 + $0x364] sm:$0xf]
    %v400 = vld [vmem:[#allocation6 + $0x368] sm:$0xf]
    %v401 = vld [vmem:[#allocation6 + $0x36c] sm:$0xf]
    %v402 = vld [vmem:[#allocation6 + $0x370] sm:$0xf]
    %v403 = vld [vmem:[#allocation6 + $0x374] sm:$0xf]
    %v404 = vld [vmem:[#allocation6 + $0x378] sm:$0xf]
    %v405 = vld [vmem:[#allocation6 + $0x37c] sm:$0xf]
    %v518 = vunpack.c.l.b16 %v70
    %v519 = vunpack.c.h.b16 %v70
    %v520 = vunpack.c.l.b16 %v71
    %v521 = vunpack.c.h.b16 %v71
    %v522 = vunpack.c.l.b16 %v72
    %v523 = vunpack.c.h.b16 %v72
    %v524 = vunpack.c.l.b16 %v73
    %v525 = vunpack.c.h.b16 %v73
    %v526 = vunpack.c.l.b16 %v74
    %v527 = vunpack.c.h.b16 %v74
    %v528 = vunpack.c.l.b16 %v75
    %v529 = vunpack.c.h.b16 %v75
    %v530 = vunpack.c.l.b16 %v76
    %v531 = vunpack.c.h.b16 %v76
    %v532 = vunpack.c.l.b16 %v77
    %v533 = vunpack.c.h.b16 %v77
    %v534 = vunpack.c.l.b16 %v78
    %v535 = vunpack.c.h.b16 %v78
    %v536 = vunpack.c.l.b16 %v79
    %v537 = vunpack.c.h.b16 %v79
    %v538 = vunpack.c.l.b16 %v80
    %v539 = vunpack.c.h.b16 %v80
    %v540 = vunpack.c.l.b16 %v81
    %v541 = vunpack.c.h.b16 %v81
    %v542 = vunpack.c.l.b16 %v82
    %v543 = vunpack.c.h.b16 %v82
    %v544 = vunpack.c.l.b16 %v83
    %v545 = vunpack.c.h.b16 %v83
    %v546 = vunpack.c.l.b16 %v84
    %v547 = vunpack.c.h.b16 %v84
    %v548 = vunpack.c.l.b16 %v85
    %v549 = vunpack.c.h.b16 %v85
    %v550 = vunpack.c.l.b16 %v86
    %v551 = vunpack.c.h.b16 %v86
    %v552 = vunpack.c.l.b16 %v87
    %v553 = vunpack.c.h.b16 %v87
    %v554 = vunpack.c.l.b16 %v88
    %v555 = vunpack.c.h.b16 %v88
    %v556 = vunpack.c.l.b16 %v89
    %v557 = vunpack.c.h.b16 %v89
    %v558 = vunpack.c.l.b16 %v90
    %v559 = vunpack.c.h.b16 %v90
    %v560 = vunpack.c.l.b16 %v91
    %v561 = vunpack.c.h.b16 %v91
    %v562 = vunpack.c.l.b16 %v92
    %v563 = vunpack.c.h.b16 %v92
    %v564 = vunpack.c.l.b16 %v93
    %v565 = vunpack.c.h.b16 %v93
    %v566 = vunpack.c.l.b16 %v94
    %v567 = vunpack.c.h.b16 %v94
    %v568 = vunpack.c.l.b16 %v95
    %v569 = vunpack.c.h.b16 %v95
    %v570 = vunpack.c.l.b16 %v96
    %v571 = vunpack.c.h.b16 %v96
    %v572 = vunpack.c.l.b16 %v97
    %v573 = vunpack.c.h.b16 %v97
    %v574 = vunpack.c.l.b16 %v98
    %v575 = vunpack.c.h.b16 %v98
    %v576 = vunpack.c.l.b16 %v99
    %v577 = vunpack.c.h.b16 %v99
    %v578 = vunpack.c.l.b16 %v100
    %v579 = vunpack.c.h.b16 %v100
    %v580 = vunpack.c.l.b16 %v101
    %v581 = vunpack.c.h.b16 %v101
    %v582 = vunpack.c.l.b16 %v102
    %v583 = vunpack.c.h.b16 %v102
    %v584 = vunpack.c.l.b16 %v103
    %v585 = vunpack.c.h.b16 %v103
    %v586 = vunpack.c.l.b16 %v104
    %v587 = vunpack.c.h.b16 %v104
    %v588 = vunpack.c.l.b16 %v105
    %v589 = vunpack.c.h.b16 %v105
    %v590 = vunpack.c.l.b16 %v106
    %v591 = vunpack.c.h.b16 %v106
    %v592 = vunpack.c.l.b16 %v107
    %v593 = vunpack.c.h.b16 %v107
    %v594 = vunpack.c.l.b16 %v108
    %v595 = vunpack.c.h.b16 %v108
    %v596 = vunpack.c.l.b16 %v109
    %v597 = vunpack.c.h.b16 %v109
    %v598 = vunpack.c.l.b16 %v110
    %v599 = vunpack.c.h.b16 %v110
    %v600 = vunpack.c.l.b16 %v111
    %v601 = vunpack.c.h.b16 %v111
    %v602 = vunpack.c.l.b16 %v112
    %v603 = vunpack.c.h.b16 %v112
    %v604 = vunpack.c.l.b16 %v113
    %v605 = vunpack.c.h.b16 %v113
    %v606 = vunpack.c.l.b16 %v114
    %v607 = vunpack.c.h.b16 %v114
    %v608 = vunpack.c.l.b16 %v115
    %v609 = vunpack.c.h.b16 %v115
    %v610 = vunpack.c.l.b16 %v116
    %v611 = vunpack.c.h.b16 %v116
    %v612 = vunpack.c.l.b16 %v117
    %v613 = vunpack.c.h.b16 %v117
    %v614 = vunpack.c.l.b16 %v118
    %v615 = vunpack.c.h.b16 %v118
    %v616 = vunpack.c.l.b16 %v119
    %v617 = vunpack.c.h.b16 %v119
    %v618 = vunpack.c.l.b16 %v120
    %v619 = vunpack.c.h.b16 %v120
    %v620 = vunpack.c.l.b16 %v121
    %v621 = vunpack.c.h.b16 %v121
    %v622 = vunpack.c.l.b16 %v122
    %v623 = vunpack.c.h.b16 %v122
    %v624 = vunpack.c.l.b16 %v123
    %v625 = vunpack.c.h.b16 %v123
    %v626 = vunpack.c.l.b16 %v124
    %v627 = vunpack.c.h.b16 %v124
    %v628 = vunpack.c.l.b16 %v125
    %v629 = vunpack.c.h.b16 %v125
    %v630 = vunpack.c.l.b16 %v126
    %v631 = vunpack.c.h.b16 %v126
    %v632 = vunpack.c.l.b16 %v127
    %v633 = vunpack.c.h.b16 %v127
    %v634 = vunpack.c.l.b16 %v128
    %v635 = vunpack.c.h.b16 %v128
    %v636 = vunpack.c.l.b16 %v129
    %v637 = vunpack.c.h.b16 %v129
    %v638 = vunpack.c.l.b16 %v130
    %v639 = vunpack.c.h.b16 %v130
    %v640 = vunpack.c.l.b16 %v131
    %v641 = vunpack.c.h.b16 %v131
    %v642 = vunpack.c.l.b16 %v132
    %v643 = vunpack.c.h.b16 %v132
    %v644 = vunpack.c.l.b16 %v133
    %v645 = vunpack.c.h.b16 %v133
    %v646 = vunpack.c.l.b16 %v134
    %v647 = vunpack.c.h.b16 %v134
    %v648 = vunpack.c.l.b16 %v135
    %v649 = vunpack.c.h.b16 %v135
    %v650 = vunpack.c.l.b16 %v136
    %v651 = vunpack.c.h.b16 %v136
    %v652 = vunpack.c.l.b16 %v137
    %v653 = vunpack.c.h.b16 %v137
    %v654 = vunpack.c.l.b16 %v138
    %v655 = vunpack.c.h.b16 %v138
    %v656 = vunpack.c.l.b16 %v139
    %v657 = vunpack.c.h.b16 %v139
    %v658 = vunpack.c.l.b16 %v140
    %v659 = vunpack.c.h.b16 %v140
    %v660 = vunpack.c.l.b16 %v141
    %v661 = vunpack.c.h.b16 %v141
    %v662 = vunpack.c.l.b16 %v142
    %v663 = vunpack.c.h.b16 %v142
    %v664 = vunpack.c.l.b16 %v143
    %v665 = vunpack.c.h.b16 %v143
    %v666 = vunpack.c.l.b16 %v144
    %v667 = vunpack.c.h.b16 %v144
    %v668 = vunpack.c.l.b16 %v145
    %v669 = vunpack.c.h.b16 %v145
    %v670 = vunpack.c.l.b16 %v146
    %v671 = vunpack.c.h.b16 %v146
    %v672 = vunpack.c.l.b16 %v147
    %v673 = vunpack.c.h.b16 %v147
    %v674 = vunpack.c.l.b16 %v148
    %v675 = vunpack.c.h.b16 %v148
    %v676 = vunpack.c.l.b16 %v149
    %v677 = vunpack.c.h.b16 %v149
    %v678 = vunpack.c.l.b16 %v150
    %v679 = vunpack.c.h.b16 %v150
    %v680 = vunpack.c.l.b16 %v151
    %v681 = vunpack.c.h.b16 %v151
    %v682 = vunpack.c.l.b16 %v152
    %v683 = vunpack.c.h.b16 %v152
    %v684 = vunpack.c.l.b16 %v153
    %v685 = vunpack.c.h.b16 %v153
    %v686 = vunpack.c.l.b16 %v154
    %v687 = vunpack.c.h.b16 %v154
    %v688 = vunpack.c.l.b16 %v155
    %v689 = vunpack.c.h.b16 %v155
    %v690 = vunpack.c.l.b16 %v156
    %v691 = vunpack.c.h.b16 %v156
    %v692 = vunpack.c.l.b16 %v157
    %v693 = vunpack.c.h.b16 %v157
    %v694 = vunpack.c.l.b16 %v158
    %v695 = vunpack.c.h.b16 %v158
    %v696 = vunpack.c.l.b16 %v159
    %v697 = vunpack.c.h.b16 %v159
    %v698 = vunpack.c.l.b16 %v160
    %v699 = vunpack.c.h.b16 %v160
    %v700 = vunpack.c.l.b16 %v161
    %v701 = vunpack.c.h.b16 %v161
    %v702 = vunpack.c.l.b16 %v162
    %v703 = vunpack.c.h.b16 %v162
    %v704 = vunpack.c.l.b16 %v163
    %v705 = vunpack.c.h.b16 %v163
    %v706 = vunpack.c.l.b16 %v164
    %v707 = vunpack.c.h.b16 %v164
    %v708 = vunpack.c.l.b16 %v165
    %v709 = vunpack.c.h.b16 %v165
    %v710 = vunpack.c.l.b16 %v166
    %v711 = vunpack.c.h.b16 %v166
    %v712 = vunpack.c.l.b16 %v167
    %v713 = vunpack.c.h.b16 %v167
    %v714 = vunpack.c.l.b16 %v168
    %v715 = vunpack.c.h.b16 %v168
    %v716 = vunpack.c.l.b16 %v169
    %v717 = vunpack.c.h.b16 %v169
    %v718 = vunpack.c.l.b16 %v170
    %v719 = vunpack.c.h.b16 %v170
    %v720 = vunpack.c.l.b16 %v171
    %v721 = vunpack.c.h.b16 %v171
    %v722 = vunpack.c.l.b16 %v172
    %v723 = vunpack.c.h.b16 %v172
    %v724 = vunpack.c.l.b16 %v173
    %v725 = vunpack.c.h.b16 %v173
    %v726 = vunpack.c.l.b16 %v174
    %v727 = vunpack.c.h.b16 %v174
    %v728 = vunpack.c.l.b16 %v175
    %v729 = vunpack.c.h.b16 %v175
    %v730 = vunpack.c.l.b16 %v176
    %v731 = vunpack.c.h.b16 %v176
    %v732 = vunpack.c.l.b16 %v177
    %v733 = vunpack.c.h.b16 %v177
    %v734 = vunpack.c.l.b16 %v178
    %v735 = vunpack.c.h.b16 %v178
    %v736 = vunpack.c.l.b16 %v179
    %v737 = vunpack.c.h.b16 %v179
    %v738 = vunpack.c.l.b16 %v180
    %v739 = vunpack.c.h.b16 %v180
    %v740 = vunpack.c.l.b16 %v181
    %v741 = vunpack.c.h.b16 %v181
    %v742 = vpack.c.b16 %v532, %v518
    %v743 = vpack.c.b16 %v533, %v519
    %v744 = vpack.c.b16 %v534, %v520
    %v745 = vpack.c.b16 %v535, %v521
    %v746 = vpack.c.b16 %v536, %v522
    %v747 = vpack.c.b16 %v537, %v523
    %v748 = vpack.c.b16 %v538, %v524
    %v749 = vpack.c.b16 %v539, %v525
    %v750 = vpack.c.b16 %v540, %v526
    %v751 = vpack.c.b16 %v541, %v527
    %v752 = vpack.c.b16 %v542, %v528
    %v753 = vpack.c.b16 %v543, %v529
    %v754 = vpack.c.b16 %v544, %v530
    %v755 = vpack.c.b16 %v545, %v531
    %v756 = vpack.c.b16 %v560, %v546
    %v757 = vpack.c.b16 %v561, %v547
    %v758 = vpack.c.b16 %v562, %v548
    %v759 = vpack.c.b16 %v563, %v549
    %v760 = vpack.c.b16 %v564, %v550
    %v761 = vpack.c.b16 %v565, %v551
    %v762 = vpack.c.b16 %v566, %v552
    %v763 = vpack.c.b16 %v567, %v553
    %v764 = vpack.c.b16 %v568, %v554
    %v765 = vpack.c.b16 %v569, %v555
    %v766 = vpack.c.b16 %v570, %v556
    %v767 = vpack.c.b16 %v571, %v557
    %v768 = vpack.c.b16 %v572, %v558
    %v769 = vpack.c.b16 %v573, %v559
    %v770 = vpack.c.b16 %v588, %v574
    %v771 = vpack.c.b16 %v589, %v575
    %v772 = vpack.c.b16 %v590, %v576
    %v773 = vpack.c.b16 %v591, %v577
    %v774 = vpack.c.b16 %v592, %v578
    %v775 = vpack.c.b16 %v593, %v579
    %v776 = vpack.c.b16 %v594, %v580
    %v777 = vpack.c.b16 %v595, %v581
    %v778 = vpack.c.b16 %v596, %v582
    %v779 = vpack.c.b16 %v597, %v583
    %v780 = vpack.c.b16 %v598, %v584
    %v781 = vpack.c.b16 %v599, %v585
    %v782 = vpack.c.b16 %v600, %v586
    %v783 = vpack.c.b16 %v601, %v587
    %v784 = vpack.c.b16 %v616, %v602
    %v785 = vpack.c.b16 %v617, %v603
    %v786 = vpack.c.b16 %v618, %v604
    %v787 = vpack.c.b16 %v619, %v605
    %v788 = vpack.c.b16 %v620, %v606
    %v789 = vpack.c.b16 %v621, %v607
    %v790 = vpack.c.b16 %v622, %v608
    %v791 = vpack.c.b16 %v623, %v609
    %v792 = vpack.c.b16 %v624, %v610
    %v793 = vpack.c.b16 %v625, %v611
    %v794 = vpack.c.b16 %v626, %v612
    %v795 = vpack.c.b16 %v627, %v613
    %v796 = vpack.c.b16 %v628, %v614
    %v797 = vpack.c.b16 %v629, %v615
    %v798 = vpack.c.b16 %v644, %v630
    %v799 = vpack.c.b16 %v645, %v631
    %v800 = vpack.c.b16 %v646, %v632
    %v801 = vpack.c.b16 %v647, %v633
    %v802 = vpack.c.b16 %v648, %v634
    %v803 = vpack.c.b16 %v649, %v635
    %v804 = vpack.c.b16 %v650, %v636
    %v805 = vpack.c.b16 %v651, %v637
    %v806 = vpack.c.b16 %v652, %v638
    %v807 = vpack.c.b16 %v653, %v639
    %v808 = vpack.c.b16 %v654, %v640
    %v809 = vpack.c.b16 %v655, %v641
    %v810 = vpack.c.b16 %v656, %v642
    %v811 = vpack.c.b16 %v657, %v643
    %v812 = vpack.c.b16 %v672, %v658
    %v813 = vpack.c.b16 %v673, %v659
    %v814 = vpack.c.b16 %v674, %v660
    %v815 = vpack.c.b16 %v675, %v661
    %v816 = vpack.c.b16 %v676, %v662
    %v817 = vpack.c.b16 %v677, %v663
    %v818 = vpack.c.b16 %v678, %v664
    %v819 = vpack.c.b16 %v679, %v665
    %v820 = vpack.c.b16 %v680, %v666
    %v821 = vpack.c.b16 %v681, %v667
    %v822 = vpack.c.b16 %v682, %v668
    %v823 = vpack.c.b16 %v683, %v669
    %v824 = vpack.c.b16 %v684, %v670
    %v825 = vpack.c.b16 %v685, %v671
    %v826 = vpack.c.b16 %v700, %v686
    %v827 = vpack.c.b16 %v701, %v687
    %v828 = vpack.c.b16 %v702, %v688
    %v829 = vpack.c.b16 %v703, %v689
    %v830 = vpack.c.b16 %v704, %v690
    %v831 = vpack.c.b16 %v705, %v691
    %v832 = vpack.c.b16 %v706, %v692
    %v833 = vpack.c.b16 %v707, %v693
    %v834 = vpack.c.b16 %v708, %v694
    %v835 = vpack.c.b16 %v709, %v695
    %v836 = vpack.c.b16 %v710, %v696
    %v837 = vpack.c.b16 %v711, %v697
    %v838 = vpack.c.b16 %v712, %v698
    %v839 = vpack.c.b16 %v713, %v699
    %v840 = vpack.c.b16 %v728, %v714
    %v841 = vpack.c.b16 %v729, %v715
    %v842 = vpack.c.b16 %v730, %v716
    %v843 = vpack.c.b16 %v731, %v717
    %v844 = vpack.c.b16 %v732, %v718
    %v845 = vpack.c.b16 %v733, %v719
    %v846 = vpack.c.b16 %v734, %v720
    %v847 = vpack.c.b16 %v735, %v721
    %v848 = vpack.c.b16 %v736, %v722
    %v849 = vpack.c.b16 %v737, %v723
    %v850 = vpack.c.b16 %v738, %v724
    %v851 = vpack.c.b16 %v739, %v725
    %v852 = vpack.c.b16 %v740, %v726
    %v853 = vpack.c.b16 %v741, %v727
    %v1190 = vunpack.c.l.b16 %v182
    %v1191 = vunpack.c.l.b16 %v183
    %v1192 = vunpack.c.l.b16 %v184
    %v1193 = vunpack.c.l.b16 %v185
    %v1194 = vunpack.c.l.b16 %v186
    %v1195 = vunpack.c.l.b16 %v187
    %v1196 = vunpack.c.l.b16 %v188
    %v1197 = vunpack.c.l.b16 %v189
    %v1198 = vunpack.c.l.b16 %v190
    %v1199 = vunpack.c.l.b16 %v191
    %v1200 = vunpack.c.l.b16 %v192
    %v1201 = vunpack.c.l.b16 %v193
    %v1202 = vunpack.c.l.b16 %v194
    %v1203 = vunpack.c.l.b16 %v195
    %v1204 = vunpack.c.l.b16 %v196
    %v1205 = vunpack.c.l.b16 %v197
    %v1206 = vunpack.c.l.b16 %v198
    %v1207 = vunpack.c.l.b16 %v199
    %v1208 = vunpack.c.l.b16 %v200
    %v1209 = vunpack.c.l.b16 %v201
    %v1210 = vunpack.c.l.b16 %v202
    %v1211 = vunpack.c.l.b16 %v203
    %v1212 = vunpack.c.l.b16 %v204
    %v1213 = vunpack.c.l.b16 %v205
    %v1214 = vunpack.c.l.b16 %v206
    %v1215 = vunpack.c.l.b16 %v207
    %v1216 = vunpack.c.l.b16 %v208
    %v1217 = vunpack.c.l.b16 %v209
    %v1218 = vunpack.c.l.b16 %v210
    %v1219 = vunpack.c.l.b16 %v211
    %v1220 = vunpack.c.l.b16 %v212
    %v1221 = vunpack.c.l.b16 %v213
    %v1222 = vunpack.c.l.b16 %v214
    %v1223 = vunpack.c.l.b16 %v215
    %v1224 = vunpack.c.l.b16 %v216
    %v1225 = vunpack.c.l.b16 %v217
    %v1226 = vunpack.c.l.b16 %v218
    %v1227 = vunpack.c.l.b16 %v219
    %v1228 = vunpack.c.l.b16 %v220
    %v1229 = vunpack.c.l.b16 %v221
    %v1230 = vunpack.c.l.b16 %v222
    %v1231 = vunpack.c.l.b16 %v223
    %v1232 = vunpack.c.l.b16 %v224
    %v1233 = vunpack.c.l.b16 %v225
    %v1234 = vunpack.c.l.b16 %v226
    %v1235 = vunpack.c.l.b16 %v227
    %v1236 = vunpack.c.l.b16 %v228
    %v1237 = vunpack.c.l.b16 %v229
    %v1238 = vunpack.c.l.b16 %v230
    %v1239 = vunpack.c.l.b16 %v231
    %v1240 = vunpack.c.l.b16 %v232
    %v1241 = vunpack.c.l.b16 %v233
    %v1242 = vunpack.c.l.b16 %v234
    %v1243 = vunpack.c.l.b16 %v235
    %v1244 = vunpack.c.l.b16 %v236
    %v1245 = vunpack.c.l.b16 %v237
    %v1246 = vunpack.c.l.b16 %v238
    %v1247 = vunpack.c.l.b16 %v239
    %v1248 = vunpack.c.l.b16 %v240
    %v1249 = vunpack.c.l.b16 %v241
    %v1250 = vunpack.c.l.b16 %v242
    %v1251 = vunpack.c.l.b16 %v243
    %v1252 = vunpack.c.l.b16 %v244
    %v1253 = vunpack.c.l.b16 %v245
    %v1254 = vunpack.c.l.b16 %v246
    %v1255 = vunpack.c.l.b16 %v247
    %v1256 = vunpack.c.l.b16 %v248
    %v1257 = vunpack.c.l.b16 %v249
    %v1258 = vunpack.c.l.b16 %v250
    %v1259 = vunpack.c.l.b16 %v251
    %v1260 = vunpack.c.l.b16 %v252
    %v1261 = vunpack.c.l.b16 %v253
    %v1262 = vunpack.c.l.b16 %v254
    %v1263 = vunpack.c.l.b16 %v255
    %v1264 = vunpack.c.l.b16 %v256
    %v1265 = vunpack.c.l.b16 %v257
    %v1266 = vunpack.c.l.b16 %v258
    %v1267 = vunpack.c.l.b16 %v259
    %v1268 = vunpack.c.l.b16 %v260
    %v1269 = vunpack.c.l.b16 %v261
    %v1270 = vunpack.c.l.b16 %v262
    %v1271 = vunpack.c.l.b16 %v263
    %v1272 = vunpack.c.l.b16 %v264
    %v1273 = vunpack.c.l.b16 %v265
    %v1274 = vunpack.c.l.b16 %v266
    %v1275 = vunpack.c.l.b16 %v267
    %v1276 = vunpack.c.l.b16 %v268
    %v1277 = vunpack.c.l.b16 %v269
    %v1278 = vunpack.c.l.b16 %v270
    %v1279 = vunpack.c.l.b16 %v271
    %v1280 = vunpack.c.l.b16 %v272
    %v1281 = vunpack.c.l.b16 %v273
    %v1282 = vunpack.c.l.b16 %v274
    %v1283 = vunpack.c.l.b16 %v275
    %v1284 = vunpack.c.l.b16 %v276
    %v1285 = vunpack.c.l.b16 %v277
    %v1286 = vunpack.c.l.b16 %v278
    %v1287 = vunpack.c.l.b16 %v279
    %v1288 = vunpack.c.l.b16 %v280
    %v1289 = vunpack.c.l.b16 %v281
    %v1290 = vunpack.c.l.b16 %v282
    %v1291 = vunpack.c.l.b16 %v283
    %v1292 = vunpack.c.l.b16 %v284
    %v1293 = vunpack.c.l.b16 %v285
    %v1294 = vunpack.c.l.b16 %v286
    %v1295 = vunpack.c.l.b16 %v287
    %v1296 = vunpack.c.l.b16 %v288
    %v1297 = vunpack.c.l.b16 %v289
    %v1298 = vunpack.c.l.b16 %v290
    %v1299 = vunpack.c.l.b16 %v291
    %v1300 = vunpack.c.l.b16 %v292
    %v1301 = vunpack.c.l.b16 %v293
    %v1302 = vunpack.c.l.b16 %v294
    %v1303 = vunpack.c.l.b16 %v295
    %v1304 = vunpack.c.l.b16 %v296
    %v1305 = vunpack.c.l.b16 %v297
    %v1306 = vunpack.c.l.b16 %v298
    %v1307 = vunpack.c.l.b16 %v299
    %v1308 = vunpack.c.l.b16 %v300
    %v1309 = vunpack.c.l.b16 %v301
    %v1310 = vunpack.c.l.b16 %v302
    %v1311 = vunpack.c.l.b16 %v303
    %v1312 = vunpack.c.l.b16 %v304
    %v1313 = vunpack.c.l.b16 %v305
    %v1314 = vunpack.c.l.b16 %v306
    %v1315 = vunpack.c.l.b16 %v307
    %v1316 = vunpack.c.l.b16 %v308
    %v1317 = vunpack.c.l.b16 %v309
    %v1318 = vunpack.c.l.b16 %v310
    %v1319 = vunpack.c.l.b16 %v311
    %v1320 = vunpack.c.l.b16 %v312
    %v1321 = vunpack.c.l.b16 %v313
    %v1322 = vunpack.c.l.b16 %v314
    %v1323 = vunpack.c.l.b16 %v315
    %v1324 = vunpack.c.l.b16 %v316
    %v1325 = vunpack.c.l.b16 %v317
    %v1326 = vunpack.c.l.b16 %v318
    %v1327 = vunpack.c.l.b16 %v319
    %v1328 = vunpack.c.l.b16 %v320
    %v1329 = vunpack.c.l.b16 %v321
    %v1330 = vunpack.c.l.b16 %v322
    %v1331 = vunpack.c.l.b16 %v323
    %v1332 = vunpack.c.l.b16 %v324
    %v1333 = vunpack.c.l.b16 %v325
    %v1334 = vunpack.c.l.b16 %v326
    %v1335 = vunpack.c.l.b16 %v327
    %v1336 = vunpack.c.l.b16 %v328
    %v1337 = vunpack.c.l.b16 %v329
    %v1338 = vunpack.c.l.b16 %v330
    %v1339 = vunpack.c.l.b16 %v331
    %v1340 = vunpack.c.l.b16 %v332
    %v1341 = vunpack.c.l.b16 %v333
    %v1342 = vunpack.c.l.b16 %v334
    %v1343 = vunpack.c.l.b16 %v335
    %v1344 = vunpack.c.l.b16 %v336
    %v1345 = vunpack.c.l.b16 %v337
    %v1346 = vunpack.c.l.b16 %v338
    %v1347 = vunpack.c.l.b16 %v339
    %v1348 = vunpack.c.l.b16 %v340
    %v1349 = vunpack.c.l.b16 %v341
    %v1350 = vunpack.c.l.b16 %v342
    %v1351 = vunpack.c.l.b16 %v343
    %v1352 = vunpack.c.l.b16 %v344
    %v1353 = vunpack.c.l.b16 %v345
    %v1354 = vunpack.c.l.b16 %v346
    %v1355 = vunpack.c.l.b16 %v347
    %v1356 = vunpack.c.l.b16 %v348
    %v1357 = vunpack.c.l.b16 %v349
    %v1358 = vunpack.c.l.b16 %v350
    %v1359 = vunpack.c.l.b16 %v351
    %v1360 = vunpack.c.l.b16 %v352
    %v1361 = vunpack.c.l.b16 %v353
    %v1362 = vunpack.c.l.b16 %v354
    %v1363 = vunpack.c.l.b16 %v355
    %v1364 = vunpack.c.l.b16 %v356
    %v1365 = vunpack.c.l.b16 %v357
    %v1366 = vunpack.c.l.b16 %v358
    %v1367 = vunpack.c.l.b16 %v359
    %v1368 = vunpack.c.l.b16 %v360
    %v1369 = vunpack.c.l.b16 %v361
    %v1370 = vunpack.c.l.b16 %v362
    %v1371 = vunpack.c.l.b16 %v363
    %v1372 = vunpack.c.l.b16 %v364
    %v1373 = vunpack.c.l.b16 %v365
    %v1374 = vunpack.c.l.b16 %v366
    %v1375 = vunpack.c.l.b16 %v367
    %v1376 = vunpack.c.l.b16 %v368
    %v1377 = vunpack.c.l.b16 %v369
    %v1378 = vunpack.c.l.b16 %v370
    %v1379 = vunpack.c.l.b16 %v371
    %v1380 = vunpack.c.l.b16 %v372
    %v1381 = vunpack.c.l.b16 %v373
    %v1382 = vunpack.c.l.b16 %v374
    %v1383 = vunpack.c.l.b16 %v375
    %v1384 = vunpack.c.l.b16 %v376
    %v1385 = vunpack.c.l.b16 %v377
    %v1386 = vunpack.c.l.b16 %v378
    %v1387 = vunpack.c.l.b16 %v379
    %v1388 = vunpack.c.l.b16 %v380
    %v1389 = vunpack.c.l.b16 %v381
    %v1390 = vunpack.c.l.b16 %v382
    %v1391 = vunpack.c.l.b16 %v383
    %v1392 = vunpack.c.l.b16 %v384
    %v1393 = vunpack.c.l.b16 %v385
    %v1394 = vunpack.c.l.b16 %v386
    %v1395 = vunpack.c.l.b16 %v387
    %v1396 = vunpack.c.l.b16 %v388
    %v1397 = vunpack.c.l.b16 %v389
    %v1398 = vunpack.c.l.b16 %v390
    %v1399 = vunpack.c.l.b16 %v391
    %v1400 = vunpack.c.l.b16 %v392
    %v1401 = vunpack.c.l.b16 %v393
    %v1402 = vunpack.c.l.b16 %v394
    %v1403 = vunpack.c.l.b16 %v395
    %v1404 = vunpack.c.l.b16 %v396
    %v1405 = vunpack.c.l.b16 %v397
    %v1406 = vunpack.c.l.b16 %v398
    %v1407 = vunpack.c.l.b16 %v399
    %v1408 = vunpack.c.l.b16 %v400
    %v1409 = vunpack.c.l.b16 %v401
    %v1410 = vunpack.c.l.b16 %v402
    %v1411 = vunpack.c.l.b16 %v403
    %v1412 = vunpack.c.l.b16 %v404
    %v1413 = vunpack.c.l.b16 %v405
    %v1414 = vpack.c.b16 %v1191, %v1190
    %v1415 = vpack.c.b16 %v1193, %v1192
    %v1416 = vpack.c.b16 %v1195, %v1194
    %v1417 = vpack.c.b16 %v1197, %v1196
    %v1418 = vpack.c.b16 %v1199, %v1198
    %v1419 = vpack.c.b16 %v1201, %v1200
    %v1420 = vpack.c.b16 %v1203, %v1202
    %v1421 = vpack.c.b16 %v1205, %v1204
    %v1422 = vpack.c.b16 %v1207, %v1206
    %v1423 = vpack.c.b16 %v1209, %v1208
    %v1424 = vpack.c.b16 %v1211, %v1210
    %v1425 = vpack.c.b16 %v1213, %v1212
    %v1426 = vpack.c.b16 %v1215, %v1214
    %v1427 = vpack.c.b16 %v1217, %v1216
    %v1428 = vpack.c.b16 %v1219, %v1218
    %v1429 = vpack.c.b16 %v1221, %v1220
    %v1430 = vpack.c.b16 %v1223, %v1222
    %v1431 = vpack.c.b16 %v1225, %v1224
    %v1432 = vpack.c.b16 %v1227, %v1226
    %v1433 = vpack.c.b16 %v1229, %v1228
    %v1434 = vpack.c.b16 %v1231, %v1230
    %v1435 = vpack.c.b16 %v1233, %v1232
    %v1436 = vpack.c.b16 %v1235, %v1234
    %v1437 = vpack.c.b16 %v1237, %v1236
    %v1438 = vpack.c.b16 %v1239, %v1238
    %v1439 = vpack.c.b16 %v1241, %v1240
    %v1440 = vpack.c.b16 %v1243, %v1242
    %v1441 = vpack.c.b16 %v1245, %v1244
    %v1442 = vpack.c.b16 %v1247, %v1246
    %v1443 = vpack.c.b16 %v1249, %v1248
    %v1444 = vpack.c.b16 %v1251, %v1250
    %v1445 = vpack.c.b16 %v1253, %v1252
    %v1446 = vpack.c.b16 %v1255, %v1254
    %v1447 = vpack.c.b16 %v1257, %v1256
    %v1448 = vpack.c.b16 %v1259, %v1258
    %v1449 = vpack.c.b16 %v1261, %v1260
    %v1450 = vpack.c.b16 %v1263, %v1262
    %v1451 = vpack.c.b16 %v1265, %v1264
    %v1452 = vpack.c.b16 %v1267, %v1266
    %v1453 = vpack.c.b16 %v1269, %v1268
    %v1454 = vpack.c.b16 %v1271, %v1270
    %v1455 = vpack.c.b16 %v1273, %v1272
    %v1456 = vpack.c.b16 %v1275, %v1274
    %v1457 = vpack.c.b16 %v1277, %v1276
    %v1458 = vpack.c.b16 %v1279, %v1278
    %v1459 = vpack.c.b16 %v1281, %v1280
    %v1460 = vpack.c.b16 %v1283, %v1282
    %v1461 = vpack.c.b16 %v1285, %v1284
    %v1462 = vpack.c.b16 %v1287, %v1286
    %v1463 = vpack.c.b16 %v1289, %v1288
    %v1464 = vpack.c.b16 %v1291, %v1290
    %v1465 = vpack.c.b16 %v1293, %v1292
    %v1466 = vpack.c.b16 %v1295, %v1294
    %v1467 = vpack.c.b16 %v1297, %v1296
    %v1468 = vpack.c.b16 %v1299, %v1298
    %v1469 = vpack.c.b16 %v1301, %v1300
    %v1470 = vpack.c.b16 %v1303, %v1302
    %v1471 = vpack.c.b16 %v1305, %v1304
    %v1472 = vpack.c.b16 %v1307, %v1306
    %v1473 = vpack.c.b16 %v1309, %v1308
    %v1474 = vpack.c.b16 %v1311, %v1310
    %v1475 = vpack.c.b16 %v1313, %v1312
    %v1476 = vpack.c.b16 %v1315, %v1314
    %v1477 = vpack.c.b16 %v1317, %v1316
    %v1478 = vpack.c.b16 %v1319, %v1318
    %v1479 = vpack.c.b16 %v1321, %v1320
    %v1480 = vpack.c.b16 %v1323, %v1322
    %v1481 = vpack.c.b16 %v1325, %v1324
    %v1482 = vpack.c.b16 %v1327, %v1326
    %v1483 = vpack.c.b16 %v1329, %v1328
    %v1484 = vpack.c.b16 %v1331, %v1330
    %v1485 = vpack.c.b16 %v1333, %v1332
    %v1486 = vpack.c.b16 %v1335, %v1334
    %v1487 = vpack.c.b16 %v1337, %v1336
    %v1488 = vpack.c.b16 %v1339, %v1338
    %v1489 = vpack.c.b16 %v1341, %v1340
    %v1490 = vpack.c.b16 %v1343, %v1342
    %v1491 = vpack.c.b16 %v1345, %v1344
    %v1492 = vpack.c.b16 %v1347, %v1346
    %v1493 = vpack.c.b16 %v1349, %v1348
    %v1494 = vpack.c.b16 %v1351, %v1350
    %v1495 = vpack.c.b16 %v1353, %v1352
    %v1496 = vpack.c.b16 %v1355, %v1354
    %v1497 = vpack.c.b16 %v1357, %v1356
    %v1498 = vpack.c.b16 %v1359, %v1358
    %v1499 = vpack.c.b16 %v1361, %v1360
    %v1500 = vpack.c.b16 %v1363, %v1362
    %v1501 = vpack.c.b16 %v1365, %v1364
    %v1502 = vpack.c.b16 %v1367, %v1366
    %v1503 = vpack.c.b16 %v1369, %v1368
    %v1504 = vpack.c.b16 %v1371, %v1370
    %v1505 = vpack.c.b16 %v1373, %v1372
    %v1506 = vpack.c.b16 %v1375, %v1374
    %v1507 = vpack.c.b16 %v1377, %v1376
    %v1508 = vpack.c.b16 %v1379, %v1378
    %v1509 = vpack.c.b16 %v1381, %v1380
    %v1510 = vpack.c.b16 %v1383, %v1382
    %v1511 = vpack.c.b16 %v1385, %v1384
    %v1512 = vpack.c.b16 %v1387, %v1386
    %v1513 = vpack.c.b16 %v1389, %v1388
    %v1514 = vpack.c.b16 %v1391, %v1390
    %v1515 = vpack.c.b16 %v1393, %v1392
    %v1516 = vpack.c.b16 %v1395, %v1394
    %v1517 = vpack.c.b16 %v1397, %v1396
    %v1518 = vpack.c.b16 %v1399, %v1398
    %v1519 = vpack.c.b16 %v1401, %v1400
    %v1520 = vpack.c.b16 %v1403, %v1402
    %v1521 = vpack.c.b16 %v1405, %v1404
    %v1522 = vpack.c.b16 %v1407, %v1406
    %v1523 = vpack.c.b16 %v1409, %v1408
    %v1524 = vpack.c.b16 %v1411, %v1410
    %v1525 = vpack.c.b16 %v1413, %v1412
    %1638 = vmatpush.bf16.msra.mxu0 %v1421
    %1639 = vmatpush.bf16.msra.mxu0 %v1420
    %1640 = vmatpush.bf16.msra.mxu0 %v1419
    %1641 = vmatpush.bf16.msra.mxu0 %v1418
    %1642 = vmatpush.bf16.msra.mxu0 %v1417
    %1643 = vmatpush.bf16.msra.mxu0 %v1416
    %1644 = vmatpush.bf16.msra.mxu0 %v1415
    %1645 = vmatpush.bf16.msra.mxu0 %v1414
    %1646 = vmatmul.bf16.gmra.mxu0 %v742
    %v1647 = vpop.f32.mrf.mxu0
    %v1648 = vadd.f32 0.0, %v1647
    %v1649 = vpop.f32.mrf.mxu0
    %v1650 = vadd.f32 0.0, %v1649
    %1651 = vmatmul.bf16.gmra.mxu0 %v756
    %v1652 = vpop.f32.mrf.mxu0
    %v1653 = vadd.f32 0.0, %v1652
    %v1654 = vpop.f32.mrf.mxu0
    %v1655 = vadd.f32 0.0, %v1654
    %1656 = vmatmul.bf16.gmra.mxu0 %v770
    %v1657 = vpop.f32.mrf.mxu0
    %v1658 = vadd.f32 0.0, %v1657
    %v1659 = vpop.f32.mrf.mxu0
    %v1660 = vadd.f32 0.0, %v1659
    %1661 = vmatmul.bf16.gmra.mxu0 %v784
    %v1662 = vpop.f32.mrf.mxu0
    %v1663 = vadd.f32 0.0, %v1662
    %v1664 = vpop.f32.mrf.mxu0
    %v1665 = vadd.f32 0.0, %v1664
    %1666 = vmatmul.bf16.gmra.mxu0 %v798
    %v1667 = vpop.f32.mrf.mxu0
    %v1668 = vadd.f32 0.0, %v1667
    %v1669 = vpop.f32.mrf.mxu0
    %v1670 = vadd.f32 0.0, %v1669
    %1671 = vmatmul.bf16.gmra.mxu0 %v812
    %v1672 = vpop.f32.mrf.mxu0
    %v1673 = vadd.f32 0.0, %v1672
    %v1674 = vpop.f32.mrf.mxu0
    %v1675 = vadd.f32 0.0, %v1674
    %1676 = vmatmul.bf16.gmra.mxu0 %v826
    %v1677 = vpop.f32.mrf.mxu0
    %v1678 = vadd.f32 0.0, %v1677
    %v1679 = vpop.f32.mrf.mxu0
    %v1680 = vadd.f32 0.0, %v1679
    %1681 = vmatmul.bf16.gmra.mxu0 %v840
    %v1682 = vpop.f32.mrf.mxu0
    %v1683 = vadd.f32 0.0, %v1682
    %v1684 = vpop.f32.mrf.mxu0
    %v1685 = vadd.f32 0.0, %v1684
    %1686 = vdwg.mxu0
    %1687 = vmatpush.bf16.msra.mxu0 %v1429
    %1688 = vmatpush.bf16.msra.mxu0 %v1428
    %1689 = vmatpush.bf16.msra.mxu0 %v1427
    %1690 = vmatpush.bf16.msra.mxu0 %v1426
    %1691 = vmatpush.bf16.msra.mxu0 %v1425
    %1692 = vmatpush.bf16.msra.mxu0 %v1424
    %1693 = vmatpush.bf16.msra.mxu0 %v1423
    %1694 = vmatpush.bf16.msra.mxu0 %v1422
    %1695 = vmatmul.bf16.gmra.mxu0 %v743
    %v1696 = vpop.f32.mrf.mxu0
    %v1697 = vadd.f32 %v1648, %v1696
    %v1698 = vpop.f32.mrf.mxu0
    %v1699 = vadd.f32 %v1650, %v1698
    %1700 = vmatmul.bf16.gmra.mxu0 %v757
    %v1701 = vpop.f32.mrf.mxu0
    %v1702 = vadd.f32 %v1653, %v1701
    %v1703 = vpop.f32.mrf.mxu0
    %v1704 = vadd.f32 %v1655, %v1703
    %1705 = vmatmul.bf16.gmra.mxu0 %v771
    %v1706 = vpop.f32.mrf.mxu0
    %v1707 = vadd.f32 %v1658, %v1706
    %v1708 = vpop.f32.mrf.mxu0
    %v1709 = vadd.f32 %v1660, %v1708
    %1710 = vmatmul.bf16.gmra.mxu0 %v785
    %v1711 = vpop.f32.mrf.mxu0
    %v1712 = vadd.f32 %v1663, %v1711
    %v1713 = vpop.f32.mrf.mxu0
    %v1714 = vadd.f32 %v1665, %v1713
    %1715 = vmatmul.bf16.gmra.mxu0 %v799
    %v1716 = vpop.f32.mrf.mxu0
    %v1717 = vadd.f32 %v1668, %v1716
    %v1718 = vpop.f32.mrf.mxu0
    %v1719 = vadd.f32 %v1670, %v1718
    %1720 = vmatmul.bf16.gmra.mxu0 %v813
    %v1721 = vpop.f32.mrf.mxu0
    %v1722 = vadd.f32 %v1673, %v1721
    %v1723 = vpop.f32.mrf.mxu0
    %v1724 = vadd.f32 %v1675, %v1723
    %1725 = vmatmul.bf16.gmra.mxu0 %v827
    %v1726 = vpop.f32.mrf.mxu0
    %v1727 = vadd.f32 %v1678, %v1726
    %v1728 = vpop.f32.mrf.mxu0
    %v1729 = vadd.f32 %v1680, %v1728
    %1730 = vmatmul.bf16.gmra.mxu0 %v841
    %v1731 = vpop.f32.mrf.mxu0
    %v1732 = vadd.f32 %v1683, %v1731
    %v1733 = vpop.f32.mrf.mxu0
    %v1734 = vadd.f32 %v1685, %v1733
    %1735 = vdwg.mxu0
    %1736 = vmatpush.bf16.msra.mxu0 %v1437
    %1737 = vmatpush.bf16.msra.mxu0 %v1436
    %1738 = vmatpush.bf16.msra.mxu0 %v1435
    %1739 = vmatpush.bf16.msra.mxu0 %v1434
    %1740 = vmatpush.bf16.msra.mxu0 %v1433
    %1741 = vmatpush.bf16.msra.mxu0 %v1432
    %1742 = vmatpush.bf16.msra.mxu0 %v1431
    %1743 = vmatpush.bf16.msra.mxu0 %v1430
    %1744 = vmatmul.bf16.gmra.mxu0 %v744
    %v1745 = vpop.f32.mrf.mxu0
    %v1746 = vadd.f32 %v1697, %v1745
    %v1747 = vpop.f32.mrf.mxu0
    %v1748 = vadd.f32 %v1699, %v1747
    %1749 = vmatmul.bf16.gmra.mxu0 %v758
    %v1750 = vpop.f32.mrf.mxu0
    %v1751 = vadd.f32 %v1702, %v1750
    %v1752 = vpop.f32.mrf.mxu0
    %v1753 = vadd.f32 %v1704, %v1752
    %1754 = vmatmul.bf16.gmra.mxu0 %v772
    %v1755 = vpop.f32.mrf.mxu0
    %v1756 = vadd.f32 %v1707, %v1755
    %v1757 = vpop.f32.mrf.mxu0
    %v1758 = vadd.f32 %v1709, %v1757
    %1759 = vmatmul.bf16.gmra.mxu0 %v786
    %v1760 = vpop.f32.mrf.mxu0
    %v1761 = vadd.f32 %v1712, %v1760
    %v1762 = vpop.f32.mrf.mxu0
    %v1763 = vadd.f32 %v1714, %v1762
    %1764 = vmatmul.bf16.gmra.mxu0 %v800
    %v1765 = vpop.f32.mrf.mxu0
    %v1766 = vadd.f32 %v1717, %v1765
    %v1767 = vpop.f32.mrf.mxu0
    %v1768 = vadd.f32 %v1719, %v1767
    %1769 = vmatmul.bf16.gmra.mxu0 %v814
    %v1770 = vpop.f32.mrf.mxu0
    %v1771 = vadd.f32 %v1722, %v1770
    %v1772 = vpop.f32.mrf.mxu0
    %v1773 = vadd.f32 %v1724, %v1772
    %1774 = vmatmul.bf16.gmra.mxu0 %v828
    %v1775 = vpop.f32.mrf.mxu0
    %v1776 = vadd.f32 %v1727, %v1775
    %v1777 = vpop.f32.mrf.mxu0
    %v1778 = vadd.f32 %v1729, %v1777
    %1779 = vmatmul.bf16.gmra.mxu0 %v842
    %v1780 = vpop.f32.mrf.mxu0
    %v1781 = vadd.f32 %v1732, %v1780
    %v1782 = vpop.f32.mrf.mxu0
    %v1783 = vadd.f32 %v1734, %v1782
    %1784 = vdwg.mxu0
    %1785 = vmatpush.bf16.msra.mxu0 %v1445
    %1786 = vmatpush.bf16.msra.mxu0 %v1444
    %1787 = vmatpush.bf16.msra.mxu0 %v1443
    %1788 = vmatpush.bf16.msra.mxu0 %v1442
    %1789 = vmatpush.bf16.msra.mxu0 %v1441
    %1790 = vmatpush.bf16.msra.mxu0 %v1440
    %1791 = vmatpush.bf16.msra.mxu0 %v1439
    %1792 = vmatpush.bf16.msra.mxu0 %v1438
    %1793 = vmatmul.bf16.gmra.mxu0 %v745
    %v1794 = vpop.f32.mrf.mxu0
    %v1795 = vadd.f32 %v1746, %v1794
    %v1796 = vpop.f32.mrf.mxu0
    %v1797 = vadd.f32 %v1748, %v1796
    %1798 = vmatmul.bf16.gmra.mxu0 %v759
    %v1799 = vpop.f32.mrf.mxu0
    %v1800 = vadd.f32 %v1751, %v1799
    %v1801 = vpop.f32.mrf.mxu0
    %v1802 = vadd.f32 %v1753, %v1801
    %1803 = vmatmul.bf16.gmra.mxu0 %v773
    %v1804 = vpop.f32.mrf.mxu0
    %v1805 = vadd.f32 %v1756, %v1804
    %v1806 = vpop.f32.mrf.mxu0
    %v1807 = vadd.f32 %v1758, %v1806
    %1808 = vmatmul.bf16.gmra.mxu0 %v787
    %v1809 = vpop.f32.mrf.mxu0
    %v1810 = vadd.f32 %v1761, %v1809
    %v1811 = vpop.f32.mrf.mxu0
    %v1812 = vadd.f32 %v1763, %v1811
    %1813 = vmatmul.bf16.gmra.mxu0 %v801
    %v1814 = vpop.f32.mrf.mxu0
    %v1815 = vadd.f32 %v1766, %v1814
    %v1816 = vpop.f32.mrf.mxu0
    %v1817 = vadd.f32 %v1768, %v1816
    %1818 = vmatmul.bf16.gmra.mxu0 %v815
    %v1819 = vpop.f32.mrf.mxu0
    %v1820 = vadd.f32 %v1771, %v1819
    %v1821 = vpop.f32.mrf.mxu0
    %v1822 = vadd.f32 %v1773, %v1821
    %1823 = vmatmul.bf16.gmra.mxu0 %v829
    %v1824 = vpop.f32.mrf.mxu0
    %v1825 = vadd.f32 %v1776, %v1824
    %v1826 = vpop.f32.mrf.mxu0
    %v1827 = vadd.f32 %v1778, %v1826
    %1828 = vmatmul.bf16.gmra.mxu0 %v843
    %v1829 = vpop.f32.mrf.mxu0
    %v1830 = vadd.f32 %v1781, %v1829
    %v1831 = vpop.f32.mrf.mxu0
    %v1832 = vadd.f32 %v1783, %v1831
    %1833 = vdwg.mxu0
    %1834 = vmatpush.bf16.msra.mxu0 %v1453
    %1835 = vmatpush.bf16.msra.mxu0 %v1452
    %1836 = vmatpush.bf16.msra.mxu0 %v1451
    %1837 = vmatpush.bf16.msra.mxu0 %v1450
    %1838 = vmatpush.bf16.msra.mxu0 %v1449
    %1839 = vmatpush.bf16.msra.mxu0 %v1448
    %1840 = vmatpush.bf16.msra.mxu0 %v1447
    %1841 = vmatpush.bf16.msra.mxu0 %v1446
    %1842 = vmatmul.bf16.gmra.mxu0 %v746
    %v1843 = vpop.f32.mrf.mxu0
    %v1844 = vadd.f32 %v1795, %v1843
    %v1845 = vpop.f32.mrf.mxu0
    %v1846 = vadd.f32 %v1797, %v1845
    %1847 = vmatmul.bf16.gmra.mxu0 %v760
    %v1848 = vpop.f32.mrf.mxu0
    %v1849 = vadd.f32 %v1800, %v1848
    %v1850 = vpop.f32.mrf.mxu0
    %v1851 = vadd.f32 %v1802, %v1850
    %1852 = vmatmul.bf16.gmra.mxu0 %v774
    %v1853 = vpop.f32.mrf.mxu0
    %v1854 = vadd.f32 %v1805, %v1853
    %v1855 = vpop.f32.mrf.mxu0
    %v1856 = vadd.f32 %v1807, %v1855
    %1857 = vmatmul.bf16.gmra.mxu0 %v788
    %v1858 = vpop.f32.mrf.mxu0
    %v1859 = vadd.f32 %v1810, %v1858
    %v1860 = vpop.f32.mrf.mxu0
    %v1861 = vadd.f32 %v1812, %v1860
    %1862 = vmatmul.bf16.gmra.mxu0 %v802
    %v1863 = vpop.f32.mrf.mxu0
    %v1864 = vadd.f32 %v1815, %v1863
    %v1865 = vpop.f32.mrf.mxu0
    %v1866 = vadd.f32 %v1817, %v1865
    %1867 = vmatmul.bf16.gmra.mxu0 %v816
    %v1868 = vpop.f32.mrf.mxu0
    %v1869 = vadd.f32 %v1820, %v1868
    %v1870 = vpop.f32.mrf.mxu0
    %v1871 = vadd.f32 %v1822, %v1870
    %1872 = vmatmul.bf16.gmra.mxu0 %v830
    %v1873 = vpop.f32.mrf.mxu0
    %v1874 = vadd.f32 %v1825, %v1873
    %v1875 = vpop.f32.mrf.mxu0
    %v1876 = vadd.f32 %v1827, %v1875
    %1877 = vmatmul.bf16.gmra.mxu0 %v844
    %v1878 = vpop.f32.mrf.mxu0
    %v1879 = vadd.f32 %v1830, %v1878
    %v1880 = vpop.f32.mrf.mxu0
    %v1881 = vadd.f32 %v1832, %v1880
    %1882 = vdwg.mxu0
    %1883 = vmatpush.bf16.msra.mxu0 %v1461
    %1884 = vmatpush.bf16.msra.mxu0 %v1460
    %1885 = vmatpush.bf16.msra.mxu0 %v1459
    %1886 = vmatpush.bf16.msra.mxu0 %v1458
    %1887 = vmatpush.bf16.msra.mxu0 %v1457
    %1888 = vmatpush.bf16.msra.mxu0 %v1456
    %1889 = vmatpush.bf16.msra.mxu0 %v1455
    %1890 = vmatpush.bf16.msra.mxu0 %v1454
    %1891 = vmatmul.bf16.gmra.mxu0 %v747
    %v1892 = vpop.f32.mrf.mxu0
    %v1893 = vadd.f32 %v1844, %v1892
    %v1894 = vpop.f32.mrf.mxu0
    %v1895 = vadd.f32 %v1846, %v1894
    %1896 = vmatmul.bf16.gmra.mxu0 %v761
    %v1897 = vpop.f32.mrf.mxu0
    %v1898 = vadd.f32 %v1849, %v1897
    %v1899 = vpop.f32.mrf.mxu0
    %v1900 = vadd.f32 %v1851, %v1899
    %1901 = vmatmul.bf16.gmra.mxu0 %v775
    %v1902 = vpop.f32.mrf.mxu0
    %v1903 = vadd.f32 %v1854, %v1902
    %v1904 = vpop.f32.mrf.mxu0
    %v1905 = vadd.f32 %v1856, %v1904
    %1906 = vmatmul.bf16.gmra.mxu0 %v789
    %v1907 = vpop.f32.mrf.mxu0
    %v1908 = vadd.f32 %v1859, %v1907
    %v1909 = vpop.f32.mrf.mxu0
    %v1910 = vadd.f32 %v1861, %v1909
    %1911 = vmatmul.bf16.gmra.mxu0 %v803
    %v1912 = vpop.f32.mrf.mxu0
    %v1913 = vadd.f32 %v1864, %v1912
    %v1914 = vpop.f32.mrf.mxu0
    %v1915 = vadd.f32 %v1866, %v1914
    %1916 = vmatmul.bf16.gmra.mxu0 %v817
    %v1917 = vpop.f32.mrf.mxu0
    %v1918 = vadd.f32 %v1869, %v1917
    %v1919 = vpop.f32.mrf.mxu0
    %v1920 = vadd.f32 %v1871, %v1919
    %1921 = vmatmul.bf16.gmra.mxu0 %v831
    %v1922 = vpop.f32.mrf.mxu0
    %v1923 = vadd.f32 %v1874, %v1922
    %v1924 = vpop.f32.mrf.mxu0
    %v1925 = vadd.f32 %v1876, %v1924
    %1926 = vmatmul.bf16.gmra.mxu0 %v845
    %v1927 = vpop.f32.mrf.mxu0
    %v1928 = vadd.f32 %v1879, %v1927
    %v1929 = vpop.f32.mrf.mxu0
    %v1930 = vadd.f32 %v1881, %v1929
    %1931 = vdwg.mxu0
    %1932 = vmatpush.bf16.msra.mxu0 %v1469
    %1933 = vmatpush.bf16.msra.mxu0 %v1468
    %1934 = vmatpush.bf16.msra.mxu0 %v1467
    %1935 = vmatpush.bf16.msra.mxu0 %v1466
    %1936 = vmatpush.bf16.msra.mxu0 %v1465
    %1937 = vmatpush.bf16.msra.mxu0 %v1464
    %1938 = vmatpush.bf16.msra.mxu0 %v1463
    %1939 = vmatpush.bf16.msra.mxu0 %v1462
    %1940 = vmatmul.bf16.gmra.mxu0 %v748
    %v1941 = vpop.f32.mrf.mxu0
    %v1942 = vadd.f32 %v1893, %v1941
    %v1943 = vpop.f32.mrf.mxu0
    %v1944 = vadd.f32 %v1895, %v1943
    %1945 = vmatmul.bf16.gmra.mxu0 %v762
    %v1946 = vpop.f32.mrf.mxu0
    %v1947 = vadd.f32 %v1898, %v1946
    %v1948 = vpop.f32.mrf.mxu0
    %v1949 = vadd.f32 %v1900, %v1948
    %1950 = vmatmul.bf16.gmra.mxu0 %v776
    %v1951 = vpop.f32.mrf.mxu0
    %v1952 = vadd.f32 %v1903, %v1951
    %v1953 = vpop.f32.mrf.mxu0
    %v1954 = vadd.f32 %v1905, %v1953
    %1955 = vmatmul.bf16.gmra.mxu0 %v790
    %v1956 = vpop.f32.mrf.mxu0
    %v1957 = vadd.f32 %v1908, %v1956
    %v1958 = vpop.f32.mrf.mxu0
    %v1959 = vadd.f32 %v1910, %v1958
    %1960 = vmatmul.bf16.gmra.mxu0 %v804
    %v1961 = vpop.f32.mrf.mxu0
    %v1962 = vadd.f32 %v1913, %v1961
    %v1963 = vpop.f32.mrf.mxu0
    %v1964 = vadd.f32 %v1915, %v1963
    %1965 = vmatmul.bf16.gmra.mxu0 %v818
    %v1966 = vpop.f32.mrf.mxu0
    %v1967 = vadd.f32 %v1918, %v1966
    %v1968 = vpop.f32.mrf.mxu0
    %v1969 = vadd.f32 %v1920, %v1968
    %1970 = vmatmul.bf16.gmra.mxu0 %v832
    %v1971 = vpop.f32.mrf.mxu0
    %v1972 = vadd.f32 %v1923, %v1971
    %v1973 = vpop.f32.mrf.mxu0
    %v1974 = vadd.f32 %v1925, %v1973
    %1975 = vmatmul.bf16.gmra.mxu0 %v846
    %v1976 = vpop.f32.mrf.mxu0
    %v1977 = vadd.f32 %v1928, %v1976
    %v1978 = vpop.f32.mrf.mxu0
    %v1979 = vadd.f32 %v1930, %v1978
    %1980 = vdwg.mxu0
    %1981 = vmatpush.bf16.msra.mxu0 %v1477
    %1982 = vmatpush.bf16.msra.mxu0 %v1476
    %1983 = vmatpush.bf16.msra.mxu0 %v1475
    %1984 = vmatpush.bf16.msra.mxu0 %v1474
    %1985 = vmatpush.bf16.msra.mxu0 %v1473
    %1986 = vmatpush.bf16.msra.mxu0 %v1472
    %1987 = vmatpush.bf16.msra.mxu0 %v1471
    %1988 = vmatpush.bf16.msra.mxu0 %v1470
    %1989 = vmatmul.bf16.gmra.mxu0 %v749
    %v1990 = vpop.f32.mrf.mxu0
    %v1991 = vadd.f32 %v1942, %v1990
    %v1992 = vpop.f32.mrf.mxu0
    %v1993 = vadd.f32 %v1944, %v1992
    %1994 = vmatmul.bf16.gmra.mxu0 %v763
    %v1995 = vpop.f32.mrf.mxu0
    %v1996 = vadd.f32 %v1947, %v1995
    %v1997 = vpop.f32.mrf.mxu0
    %v1998 = vadd.f32 %v1949, %v1997
    %1999 = vmatmul.bf16.gmra.mxu0 %v777
    %v2000 = vpop.f32.mrf.mxu0
    %v2001 = vadd.f32 %v1952, %v2000
    %v2002 = vpop.f32.mrf.mxu0
    %v2003 = vadd.f32 %v1954, %v2002
    %2004 = vmatmul.bf16.gmra.mxu0 %v791
    %v2005 = vpop.f32.mrf.mxu0
    %v2006 = vadd.f32 %v1957, %v2005
    %v2007 = vpop.f32.mrf.mxu0
    %v2008 = vadd.f32 %v1959, %v2007
    %2009 = vmatmul.bf16.gmra.mxu0 %v805
    %v2010 = vpop.f32.mrf.mxu0
    %v2011 = vadd.f32 %v1962, %v2010
    %v2012 = vpop.f32.mrf.mxu0
    %v2013 = vadd.f32 %v1964, %v2012
    %2014 = vmatmul.bf16.gmra.mxu0 %v819
    %v2015 = vpop.f32.mrf.mxu0
    %v2016 = vadd.f32 %v1967, %v2015
    %v2017 = vpop.f32.mrf.mxu0
    %v2018 = vadd.f32 %v1969, %v2017
    %2019 = vmatmul.bf16.gmra.mxu0 %v833
    %v2020 = vpop.f32.mrf.mxu0
    %v2021 = vadd.f32 %v1972, %v2020
    %v2022 = vpop.f32.mrf.mxu0
    %v2023 = vadd.f32 %v1974, %v2022
    %2024 = vmatmul.bf16.gmra.mxu0 %v847
    %v2025 = vpop.f32.mrf.mxu0
    %v2026 = vadd.f32 %v1977, %v2025
    %v2027 = vpop.f32.mrf.mxu0
    %v2028 = vadd.f32 %v1979, %v2027
    %2029 = vdwg.mxu0
    %2030 = vmatpush.bf16.msra.mxu0 %v1485
    %2031 = vmatpush.bf16.msra.mxu0 %v1484
    %2032 = vmatpush.bf16.msra.mxu0 %v1483
    %2033 = vmatpush.bf16.msra.mxu0 %v1482
    %2034 = vmatpush.bf16.msra.mxu0 %v1481
    %2035 = vmatpush.bf16.msra.mxu0 %v1480
    %2036 = vmatpush.bf16.msra.mxu0 %v1479
    %2037 = vmatpush.bf16.msra.mxu0 %v1478
    %2038 = vmatmul.bf16.gmra.mxu0 %v750
    %v2039 = vpop.f32.mrf.mxu0
    %v2040 = vadd.f32 %v1991, %v2039
    %v2041 = vpop.f32.mrf.mxu0
    %v2042 = vadd.f32 %v1993, %v2041
    %2043 = vmatmul.bf16.gmra.mxu0 %v764
    %v2044 = vpop.f32.mrf.mxu0
    %v2045 = vadd.f32 %v1996, %v2044
    %v2046 = vpop.f32.mrf.mxu0
    %v2047 = vadd.f32 %v1998, %v2046
    %2048 = vmatmul.bf16.gmra.mxu0 %v778
    %v2049 = vpop.f32.mrf.mxu0
    %v2050 = vadd.f32 %v2001, %v2049
    %v2051 = vpop.f32.mrf.mxu0
    %v2052 = vadd.f32 %v2003, %v2051
    %2053 = vmatmul.bf16.gmra.mxu0 %v792
    %v2054 = vpop.f32.mrf.mxu0
    %v2055 = vadd.f32 %v2006, %v2054
    %v2056 = vpop.f32.mrf.mxu0
    %v2057 = vadd.f32 %v2008, %v2056
    %2058 = vmatmul.bf16.gmra.mxu0 %v806
    %v2059 = vpop.f32.mrf.mxu0
    %v2060 = vadd.f32 %v2011, %v2059
    %v2061 = vpop.f32.mrf.mxu0
    %v2062 = vadd.f32 %v2013, %v2061
    %2063 = vmatmul.bf16.gmra.mxu0 %v820
    %v2064 = vpop.f32.mrf.mxu0
    %v2065 = vadd.f32 %v2016, %v2064
    %v2066 = vpop.f32.mrf.mxu0
    %v2067 = vadd.f32 %v2018, %v2066
    %2068 = vmatmul.bf16.gmra.mxu0 %v834
    %v2069 = vpop.f32.mrf.mxu0
    %v2070 = vadd.f32 %v2021, %v2069
    %v2071 = vpop.f32.mrf.mxu0
    %v2072 = vadd.f32 %v2023, %v2071
    %2073 = vmatmul.bf16.gmra.mxu0 %v848
    %v2074 = vpop.f32.mrf.mxu0
    %v2075 = vadd.f32 %v2026, %v2074
    %v2076 = vpop.f32.mrf.mxu0
    %v2077 = vadd.f32 %v2028, %v2076
    %2078 = vdwg.mxu0
    %2079 = vmatpush.bf16.msra.mxu0 %v1493
    %2080 = vmatpush.bf16.msra.mxu0 %v1492
    %2081 = vmatpush.bf16.msra.mxu0 %v1491
    %2082 = vmatpush.bf16.msra.mxu0 %v1490
    %2083 = vmatpush.bf16.msra.mxu0 %v1489
    %2084 = vmatpush.bf16.msra.mxu0 %v1488
    %2085 = vmatpush.bf16.msra.mxu0 %v1487
    %2086 = vmatpush.bf16.msra.mxu0 %v1486
    %2087 = vmatmul.bf16.gmra.mxu0 %v751
    %v2088 = vpop.f32.mrf.mxu0
    %v2089 = vadd.f32 %v2040, %v2088
    %v2090 = vpop.f32.mrf.mxu0
    %v2091 = vadd.f32 %v2042, %v2090
    %2092 = vmatmul.bf16.gmra.mxu0 %v765
    %v2093 = vpop.f32.mrf.mxu0
    %v2094 = vadd.f32 %v2045, %v2093
    %v2095 = vpop.f32.mrf.mxu0
    %v2096 = vadd.f32 %v2047, %v2095
    %2097 = vmatmul.bf16.gmra.mxu0 %v779
    %v2098 = vpop.f32.mrf.mxu0
    %v2099 = vadd.f32 %v2050, %v2098
    %v2100 = vpop.f32.mrf.mxu0
    %v2101 = vadd.f32 %v2052, %v2100
    %2102 = vmatmul.bf16.gmra.mxu0 %v793
    %v2103 = vpop.f32.mrf.mxu0
    %v2104 = vadd.f32 %v2055, %v2103
    %v2105 = vpop.f32.mrf.mxu0
    %v2106 = vadd.f32 %v2057, %v2105
    %2107 = vmatmul.bf16.gmra.mxu0 %v807
    %v2108 = vpop.f32.mrf.mxu0
    %v2109 = vadd.f32 %v2060, %v2108
    %v2110 = vpop.f32.mrf.mxu0
    %v2111 = vadd.f32 %v2062, %v2110
    %2112 = vmatmul.bf16.gmra.mxu0 %v821
    %v2113 = vpop.f32.mrf.mxu0
    %v2114 = vadd.f32 %v2065, %v2113
    %v2115 = vpop.f32.mrf.mxu0
    %v2116 = vadd.f32 %v2067, %v2115
    %2117 = vmatmul.bf16.gmra.mxu0 %v835
    %v2118 = vpop.f32.mrf.mxu0
    %v2119 = vadd.f32 %v2070, %v2118
    %v2120 = vpop.f32.mrf.mxu0
    %v2121 = vadd.f32 %v2072, %v2120
    %2122 = vmatmul.bf16.gmra.mxu0 %v849
    %v2123 = vpop.f32.mrf.mxu0
    %v2124 = vadd.f32 %v2075, %v2123
    %v2125 = vpop.f32.mrf.mxu0
    %v2126 = vadd.f32 %v2077, %v2125
    %2127 = vdwg.mxu0
    %2128 = vmatpush.bf16.msra.mxu0 %v1501
    %2129 = vmatpush.bf16.msra.mxu0 %v1500
    %2130 = vmatpush.bf16.msra.mxu0 %v1499
    %2131 = vmatpush.bf16.msra.mxu0 %v1498
    %2132 = vmatpush.bf16.msra.mxu0 %v1497
    %2133 = vmatpush.bf16.msra.mxu0 %v1496
    %2134 = vmatpush.bf16.msra.mxu0 %v1495
    %2135 = vmatpush.bf16.msra.mxu0 %v1494
    %2136 = vmatmul.bf16.gmra.mxu0 %v752
    %v2137 = vpop.f32.mrf.mxu0
    %v2138 = vadd.f32 %v2089, %v2137
    %v2139 = vpop.f32.mrf.mxu0
    %v2140 = vadd.f32 %v2091, %v2139
    %2141 = vmatmul.bf16.gmra.mxu0 %v766
    %v2142 = vpop.f32.mrf.mxu0
    %v2143 = vadd.f32 %v2094, %v2142
    %v2144 = vpop.f32.mrf.mxu0
    %v2145 = vadd.f32 %v2096, %v2144
    %2146 = vmatmul.bf16.gmra.mxu0 %v780
    %v2147 = vpop.f32.mrf.mxu0
    %v2148 = vadd.f32 %v2099, %v2147
    %v2149 = vpop.f32.mrf.mxu0
    %v2150 = vadd.f32 %v2101, %v2149
    %2151 = vmatmul.bf16.gmra.mxu0 %v794
    %v2152 = vpop.f32.mrf.mxu0
    %v2153 = vadd.f32 %v2104, %v2152
    %v2154 = vpop.f32.mrf.mxu0
    %v2155 = vadd.f32 %v2106, %v2154
    %2156 = vmatmul.bf16.gmra.mxu0 %v808
    %v2157 = vpop.f32.mrf.mxu0
    %v2158 = vadd.f32 %v2109, %v2157
    %v2159 = vpop.f32.mrf.mxu0
    %v2160 = vadd.f32 %v2111, %v2159
    %2161 = vmatmul.bf16.gmra.mxu0 %v822
    %v2162 = vpop.f32.mrf.mxu0
    %v2163 = vadd.f32 %v2114, %v2162
    %v2164 = vpop.f32.mrf.mxu0
    %v2165 = vadd.f32 %v2116, %v2164
    %2166 = vmatmul.bf16.gmra.mxu0 %v836
    %v2167 = vpop.f32.mrf.mxu0
    %v2168 = vadd.f32 %v2119, %v2167
    %v2169 = vpop.f32.mrf.mxu0
    %v2170 = vadd.f32 %v2121, %v2169
    %2171 = vmatmul.bf16.gmra.mxu0 %v850
    %v2172 = vpop.f32.mrf.mxu0
    %v2173 = vadd.f32 %v2124, %v2172
    %v2174 = vpop.f32.mrf.mxu0
    %v2175 = vadd.f32 %v2126, %v2174
    %2176 = vdwg.mxu0
    %2177 = vmatpush.bf16.msra.mxu0 %v1509
    %2178 = vmatpush.bf16.msra.mxu0 %v1508
    %2179 = vmatpush.bf16.msra.mxu0 %v1507
    %2180 = vmatpush.bf16.msra.mxu0 %v1506
    %2181 = vmatpush.bf16.msra.mxu0 %v1505
    %2182 = vmatpush.bf16.msra.mxu0 %v1504
    %2183 = vmatpush.bf16.msra.mxu0 %v1503
    %2184 = vmatpush.bf16.msra.mxu0 %v1502
    %2185 = vmatmul.bf16.gmra.mxu0 %v753
    %v2186 = vpop.f32.mrf.mxu0
    %v2187 = vadd.f32 %v2138, %v2186
    %v2188 = vpop.f32.mrf.mxu0
    %v2189 = vadd.f32 %v2140, %v2188
    %2190 = vmatmul.bf16.gmra.mxu0 %v767
    %v2191 = vpop.f32.mrf.mxu0
    %v2192 = vadd.f32 %v2143, %v2191
    %v2193 = vpop.f32.mrf.mxu0
    %v2194 = vadd.f32 %v2145, %v2193
    %2195 = vmatmul.bf16.gmra.mxu0 %v781
    %v2196 = vpop.f32.mrf.mxu0
    %v2197 = vadd.f32 %v2148, %v2196
    %v2198 = vpop.f32.mrf.mxu0
    %v2199 = vadd.f32 %v2150, %v2198
    %2200 = vmatmul.bf16.gmra.mxu0 %v795
    %v2201 = vpop.f32.mrf.mxu0
    %v2202 = vadd.f32 %v2153, %v2201
    %v2203 = vpop.f32.mrf.mxu0
    %v2204 = vadd.f32 %v2155, %v2203
    %2205 = vmatmul.bf16.gmra.mxu0 %v809
    %v2206 = vpop.f32.mrf.mxu0
    %v2207 = vadd.f32 %v2158, %v2206
    %v2208 = vpop.f32.mrf.mxu0
    %v2209 = vadd.f32 %v2160, %v2208
    %2210 = vmatmul.bf16.gmra.mxu0 %v823
    %v2211 = vpop.f32.mrf.mxu0
    %v2212 = vadd.f32 %v2163, %v2211
    %v2213 = vpop.f32.mrf.mxu0
    %v2214 = vadd.f32 %v2165, %v2213
    %2215 = vmatmul.bf16.gmra.mxu0 %v837
    %v2216 = vpop.f32.mrf.mxu0
    %v2217 = vadd.f32 %v2168, %v2216
    %v2218 = vpop.f32.mrf.mxu0
    %v2219 = vadd.f32 %v2170, %v2218
    %2220 = vmatmul.bf16.gmra.mxu0 %v851
    %v2221 = vpop.f32.mrf.mxu0
    %v2222 = vadd.f32 %v2173, %v2221
    %v2223 = vpop.f32.mrf.mxu0
    %v2224 = vadd.f32 %v2175, %v2223
    %2225 = vdwg.mxu0
    %2226 = vmatpush.bf16.msra.mxu0 %v1517
    %2227 = vmatpush.bf16.msra.mxu0 %v1516
    %2228 = vmatpush.bf16.msra.mxu0 %v1515
    %2229 = vmatpush.bf16.msra.mxu0 %v1514
    %2230 = vmatpush.bf16.msra.mxu0 %v1513
    %2231 = vmatpush.bf16.msra.mxu0 %v1512
    %2232 = vmatpush.bf16.msra.mxu0 %v1511
    %2233 = vmatpush.bf16.msra.mxu0 %v1510
    %2234 = vmatmul.bf16.gmra.mxu0 %v754
    %v2235 = vpop.f32.mrf.mxu0
    %v2236 = vadd.f32 %v2187, %v2235
    %v2237 = vpop.f32.mrf.mxu0
    %v2238 = vadd.f32 %v2189, %v2237
    %2239 = vmatmul.bf16.gmra.mxu0 %v768
    %v2240 = vpop.f32.mrf.mxu0
    %v2241 = vadd.f32 %v2192, %v2240
    %v2242 = vpop.f32.mrf.mxu0
    %v2243 = vadd.f32 %v2194, %v2242
    %2244 = vmatmul.bf16.gmra.mxu0 %v782
    %v2245 = vpop.f32.mrf.mxu0
    %v2246 = vadd.f32 %v2197, %v2245
    %v2247 = vpop.f32.mrf.mxu0
    %v2248 = vadd.f32 %v2199, %v2247
    %2249 = vmatmul.bf16.gmra.mxu0 %v796
    %v2250 = vpop.f32.mrf.mxu0
    %v2251 = vadd.f32 %v2202, %v2250
    %v2252 = vpop.f32.mrf.mxu0
    %v2253 = vadd.f32 %v2204, %v2252
    %2254 = vmatmul.bf16.gmra.mxu0 %v810
    %v2255 = vpop.f32.mrf.mxu0
    %v2256 = vadd.f32 %v2207, %v2255
    %v2257 = vpop.f32.mrf.mxu0
    %v2258 = vadd.f32 %v2209, %v2257
    %2259 = vmatmul.bf16.gmra.mxu0 %v824
    %v2260 = vpop.f32.mrf.mxu0
    %v2261 = vadd.f32 %v2212, %v2260
    %v2262 = vpop.f32.mrf.mxu0
    %v2263 = vadd.f32 %v2214, %v2262
    %2264 = vmatmul.bf16.gmra.mxu0 %v838
    %v2265 = vpop.f32.mrf.mxu0
    %v2266 = vadd.f32 %v2217, %v2265
    %v2267 = vpop.f32.mrf.mxu0
    %v2268 = vadd.f32 %v2219, %v2267
    %2269 = vmatmul.bf16.gmra.mxu0 %v852
    %v2270 = vpop.f32.mrf.mxu0
    %v2271 = vadd.f32 %v2222, %v2270
    %v2272 = vpop.f32.mrf.mxu0
    %v2273 = vadd.f32 %v2224, %v2272
    %2274 = vdwg.mxu0
    %2275 = vmatpush.bf16.msra.mxu0 %v1525
    %2276 = vmatpush.bf16.msra.mxu0 %v1524
    %2277 = vmatpush.bf16.msra.mxu0 %v1523
    %2278 = vmatpush.bf16.msra.mxu0 %v1522
    %2279 = vmatpush.bf16.msra.mxu0 %v1521
    %2280 = vmatpush.bf16.msra.mxu0 %v1520
    %2281 = vmatpush.bf16.msra.mxu0 %v1519
    %2282 = vmatpush.bf16.msra.mxu0 %v1518
    %2283 = vmatmul.bf16.gmra.mxu0 %v755
    %v2284 = vpop.f32.mrf.mxu0
    %v2285 = vadd.f32 %v2236, %v2284
    %v2286 = vpop.f32.mrf.mxu0
    %v2287 = vadd.f32 %v2238, %v2286
    %2288 = vmatmul.bf16.gmra.mxu0 %v769
    %v2289 = vpop.f32.mrf.mxu0
    %v2290 = vadd.f32 %v2241, %v2289
    %v2291 = vpop.f32.mrf.mxu0
    %v2292 = vadd.f32 %v2243, %v2291
    %2293 = vmatmul.bf16.gmra.mxu0 %v783
    %v2294 = vpop.f32.mrf.mxu0
    %v2295 = vadd.f32 %v2246, %v2294
    %v2296 = vpop.f32.mrf.mxu0
    %v2297 = vadd.f32 %v2248, %v2296
    %2298 = vmatmul.bf16.gmra.mxu0 %v797
    %v2299 = vpop.f32.mrf.mxu0
    %v2300 = vadd.f32 %v2251, %v2299
    %v2301 = vpop.f32.mrf.mxu0
    %v2302 = vadd.f32 %v2253, %v2301
    %2303 = vmatmul.bf16.gmra.mxu0 %v811
    %v2304 = vpop.f32.mrf.mxu0
    %v2305 = vadd.f32 %v2256, %v2304
    %v2306 = vpop.f32.mrf.mxu0
    %v2307 = vadd.f32 %v2258, %v2306
    %2308 = vmatmul.bf16.gmra.mxu0 %v825
    %v2309 = vpop.f32.mrf.mxu0
    %v2310 = vadd.f32 %v2261, %v2309
    %v2311 = vpop.f32.mrf.mxu0
    %v2312 = vadd.f32 %v2263, %v2311
    %2313 = vmatmul.bf16.gmra.mxu0 %v839
    %v2314 = vpop.f32.mrf.mxu0
    %v2315 = vadd.f32 %v2266, %v2314
    %v2316 = vpop.f32.mrf.mxu0
    %v2317 = vadd.f32 %v2268, %v2316
    %2318 = vmatmul.bf16.gmra.mxu0 %v853
    %v2319 = vpop.f32.mrf.mxu0
    %v2320 = vadd.f32 %v2271, %v2319
    %v2321 = vpop.f32.mrf.mxu0
    %v2322 = vadd.f32 %v2273, %v2321
    %2323 = vdwg.mxu0
    %v2324 = vld [vmem:[#allocation2] sm:$0x3]
    %v2325 = vadd.f32 %v2285, %v2287
    %v2326 = vadd.f32 %v2325, %v2290
    %v2327 = vadd.f32 %v2326, %v2292
    %v2328 = vadd.f32 %v2327, %v2295
    %v2329 = vadd.f32 %v2328, %v2297
    %v2330 = vadd.f32 %v2329, %v2300
    %v2331 = vadd.f32 %v2330, %v2302
    %v2332 = vrot.slane %v2331, 4
    %v2333 = vadd.f32 %v2331, %v2332
    %v2334 = vrot.slane %v2333, 2
    %v2335 = vadd.f32 %v2333, %v2334
    %v2336 = vrot.slane %v2335, 1
    %v2337 = vadd.f32 %v2335, %v2336
    %v2338 = vadd.f32 %v2305, %v2307
    %v2339 = vadd.f32 %v2338, %v2310
    %v2340 = vadd.f32 %v2339, %v2312
    %v2341 = vadd.f32 %v2340, %v2315
    %v2342 = vadd.f32 %v2341, %v2317
    %v2343 = vadd.f32 %v2342, %v2320
    %v2344 = vadd.f32 %v2343, %v2322
    %v2345 = vrot.slane %v2344, 4
    %v2346 = vadd.f32 %v2344, %v2345
    %v2347 = vrot.slane %v2346, 2
    %v2348 = vadd.f32 %v2346, %v2347
    %v2349 = vrot.slane %v2348, 1
    %v2350 = vadd.f32 %v2348, %v2349
    %vm2353 = vcmask 1041409
    %v2354 = vsel %vm2353, %v2350, %v2337
    %v2356 = vadd.f32 %v2324, %v2354
    %2357 = vst [vmem:[#allocation2] sm:$0x3] %v2356
    // Predicated region
    $region30: #{cnn_expert1_forward.1} parent=1 // pred_check
      %p2358 = pneg %p65
    $region31: #{cnn_expert1_forward.1} parent=1 // pred_check_branch
      %2360 = sbr.rel (%p2358) target = $region33
    $region32: #{cnn_expert1_forward.1} parent=1 // pred_region
      %v2361 = vld [vmem:[#allocation8 + $0x300] sm:$0xff]
      %v2362 = vld [vmem:[#allocation8 + $0x308] sm:$0xff]
      %v2363 = vld [vmem:[#allocation2] sm:$0x3]
      %v2364 = vmul.f32 %v2363, 0.015625
      %v2365 = vperm.slane %v2361, 0
      %v2366 = vadd.f32 %v2364, %v2365
      %2367 = vst [vmem:[#allocation9] sm:$0x3] %v2366
      %v2368 = vld [vmem:[#allocation8] sm:$0xff]
      %v2369 = vld [vmem:[#allocation8 + $0x8] sm:$0xff]
      %v2370 = vld [vmem:[#allocation8 + $0x10] sm:$0xff]
      %v2371 = vld [vmem:[#allocation8 + $0x18] sm:$0xff]
      %v2372 = vld [vmem:[#allocation8 + $0x20] sm:$0xff]
      %v2373 = vld [vmem:[#allocation8 + $0x28] sm:$0xff]
      %v2374 = vld [vmem:[#allocation8 + $0x30] sm:$0xff]
      %v2375 = vld [vmem:[#allocation8 + $0x38] sm:$0xff]
      %v2376 = vld [vmem:[#allocation8 + $0x40] sm:$0xff]
      %v2377 = vld [vmem:[#allocation8 + $0x48] sm:$0xff]
      %v2378 = vld [vmem:[#allocation8 + $0x50] sm:$0xff]
      %v2379 = vld [vmem:[#allocation8 + $0x58] sm:$0xff]
      %v2380 = vld [vmem:[#allocation8 + $0x60] sm:$0xff]
      %v2381 = vld [vmem:[#allocation8 + $0x68] sm:$0xff]
      %v2382 = vld [vmem:[#allocation8 + $0x70] sm:$0xff]
      %v2383 = vld [vmem:[#allocation8 + $0x78] sm:$0xff]
      %v2384 = vld [vmem:[#allocation8 + $0x80] sm:$0xff]
      %v2385 = vld [vmem:[#allocation8 + $0x88] sm:$0xff]
      %v2386 = vld [vmem:[#allocation8 + $0x90] sm:$0xff]
      %v2387 = vld [vmem:[#allocation8 + $0x98] sm:$0xff]
      %v2388 = vld [vmem:[#allocation8 + $0xa0] sm:$0xff]
      %v2389 = vld [vmem:[#allocation8 + $0xa8] sm:$0xff]
      %v2390 = vld [vmem:[#allocation8 + $0xb0] sm:$0xff]
      %v2391 = vld [vmem:[#allocation8 + $0xb8] sm:$0xff]
      %v2392 = vld [vmem:[#allocation8 + $0xc0] sm:$0xff]
      %v2393 = vld [vmem:[#allocation8 + $0xc8] sm:$0xff]
      %v2394 = vld [vmem:[#allocation8 + $0xd0] sm:$0xff]
      %v2395 = vld [vmem:[#allocation8 + $0xd8] sm:$0xff]
      %v2396 = vld [vmem:[#allocation8 + $0xe0] sm:$0xff]
      %v2397 = vld [vmem:[#allocation8 + $0xe8] sm:$0xff]
      %v2398 = vld [vmem:[#allocation8 + $0xf0] sm:$0xff]
      %v2399 = vld [vmem:[#allocation8 + $0xf8] sm:$0xff]
      %v2400 = vperm.slane %v2361, 1
      %v2401 = vperm.slane %v2362, 1
      %2402 = vmatpush.msra.mxu0 %v2398
      %2403 = vmatpush.msra.mxu0 %v2396
      %2404 = vmatpush.msra.mxu0 %v2394
      %2405 = vmatpush.msra.mxu0 %v2392
      %2406 = vmatpush.msra.mxu0 %v2390
      %2407 = vmatpush.msra.mxu0 %v2388
      %2408 = vmatpush.msra.mxu0 %v2386
      %2409 = vmatpush.msra.mxu0 %v2384
      %2410 = vmatpush.msra.mxu0 %v2382
      %2411 = vmatpush.msra.mxu0 %v2380
      %2412 = vmatpush.msra.mxu0 %v2378
      %2413 = vmatpush.msra.mxu0 %v2376
      %2414 = vmatpush.msra.mxu0 %v2374
      %2415 = vmatpush.msra.mxu0 %v2372
      %2416 = vmatpush.msra.mxu0 %v2370
      %2417 = vmatpush.msra.mxu0 %v2368
      %2418 = vmatmul.f32.gmra.mxu0 %v2366
      %v2419 = vpop.f32.mrf.mxu0
      %v2420 = vadd.f32 %v2400, %v2419
      %2421 = vdwg.mxu0
      %2422 = vmatpush.msra.mxu0 %v2399
      %2423 = vmatpush.msra.mxu0 %v2397
      %2424 = vmatpush.msra.mxu0 %v2395
      %2425 = vmatpush.msra.mxu0 %v2393
      %2426 = vmatpush.msra.mxu0 %v2391
      %2427 = vmatpush.msra.mxu0 %v2389
      %2428 = vmatpush.msra.mxu0 %v2387
      %2429 = vmatpush.msra.mxu0 %v2385
      %2430 = vmatpush.msra.mxu0 %v2383
      %2431 = vmatpush.msra.mxu0 %v2381
      %2432 = vmatpush.msra.mxu0 %v2379
      %2433 = vmatpush.msra.mxu0 %v2377
      %2434 = vmatpush.msra.mxu0 %v2375
      %2435 = vmatpush.msra.mxu0 %v2373
      %2436 = vmatpush.msra.mxu0 %v2371
      %2437 = vmatpush.msra.mxu0 %v2369
      %2438 = vmatmul.f32.gmra.mxu0 %v2366
      %v2439 = vpop.f32.mrf.mxu0
      %v2440 = vadd.f32 %v2401, %v2439
      %2441 = vdwg.mxu0
      %v2442 = vld [vmem:[#allocation8 + $0x100] sm:$0xff]
      %v2443 = vld [vmem:[#allocation8 + $0x110] sm:$0xff]
      %v2444 = vld [vmem:[#allocation8 + $0x120] sm:$0xff]
      %v2445 = vld [vmem:[#allocation8 + $0x130] sm:$0xff]
      %v2446 = vld [vmem:[#allocation8 + $0x140] sm:$0xff]
      %v2447 = vld [vmem:[#allocation8 + $0x150] sm:$0xff]
      %v2448 = vld [vmem:[#allocation8 + $0x160] sm:$0xff]
      %v2449 = vld [vmem:[#allocation8 + $0x170] sm:$0xff]
      %v2450 = vld [vmem:[#allocation8 + $0x180] sm:$0xff]
      %v2451 = vld [vmem:[#allocation8 + $0x190] sm:$0xff]
      %v2452 = vld [vmem:[#allocation8 + $0x1a0] sm:$0xff]
      %v2453 = vld [vmem:[#allocation8 + $0x1b0] sm:$0xff]
      %v2454 = vld [vmem:[#allocation8 + $0x1c0] sm:$0xff]
      %v2455 = vld [vmem:[#allocation8 + $0x1d0] sm:$0xff]
      %v2456 = vld [vmem:[#allocation8 + $0x1e0] sm:$0xff]
      %v2457 = vld [vmem:[#allocation8 + $0x1f0] sm:$0xff]
      %v2458 = vld [vmem:[#allocation8 + $0x200] sm:$0xff]
      %v2459 = vld [vmem:[#allocation8 + $0x210] sm:$0xff]
      %v2460 = vld [vmem:[#allocation8 + $0x220] sm:$0xff]
      %v2461 = vld [vmem:[#allocation8 + $0x230] sm:$0xff]
      %v2462 = vld [vmem:[#allocation8 + $0x240] sm:$0xff]
      %v2463 = vld [vmem:[#allocation8 + $0x250] sm:$0xff]
      %v2464 = vld [vmem:[#allocation8 + $0x260] sm:$0xff]
      %v2465 = vld [vmem:[#allocation8 + $0x270] sm:$0xff]
      %v2466 = vld [vmem:[#allocation8 + $0x280] sm:$0xff]
      %v2467 = vld [vmem:[#allocation8 + $0x290] sm:$0xff]
      %v2468 = vld [vmem:[#allocation8 + $0x2a0] sm:$0xff]
      %v2469 = vld [vmem:[#allocation8 + $0x2b0] sm:$0xff]
      %v2470 = vld [vmem:[#allocation8 + $0x2c0] sm:$0xff]
      %v2471 = vld [vmem:[#allocation8 + $0x2d0] sm:$0xff]
      %v2472 = vld [vmem:[#allocation8 + $0x2e0] sm:$0xff]
      %v2473 = vld [vmem:[#allocation8 + $0x2f0] sm:$0xff]
      %v2474 = vperm.slane %v2361, 2
      %2475 = vmatpush.msra.mxu0 %v2457
      %2476 = vmatpush.msra.mxu0 %v2456
      %2477 = vmatpush.msra.mxu0 %v2455
      %2478 = vmatpush.msra.mxu0 %v2454
      %2479 = vmatpush.msra.mxu0 %v2453
      %2480 = vmatpush.msra.mxu0 %v2452
      %2481 = vmatpush.msra.mxu0 %v2451
      %2482 = vmatpush.msra.mxu0 %v2450
      %2483 = vmatpush.msra.mxu0 %v2449
      %2484 = vmatpush.msra.mxu0 %v2448
      %2485 = vmatpush.msra.mxu0 %v2447
      %2486 = vmatpush.msra.mxu0 %v2446
      %2487 = vmatpush.msra.mxu0 %v2445
      %2488 = vmatpush.msra.mxu0 %v2444
      %2489 = vmatpush.msra.mxu0 %v2443
      %2490 = vmatpush.msra.mxu0 %v2442
      %2491 = vmatmul.f32.gmra.mxu0 %v2420
      %v2492 = vpop.f32.mrf.mxu0
      %v2493 = vadd.f32 %v2474, %v2492
      %2494 = vdwg.mxu0
      %2495 = vmatpush.msra.mxu0 %v2473
      %2496 = vmatpush.msra.mxu0 %v2472
      %2497 = vmatpush.msra.mxu0 %v2471
      %2498 = vmatpush.msra.mxu0 %v2470
      %2499 = vmatpush.msra.mxu0 %v2469
      %2500 = vmatpush.msra.mxu0 %v2468
      %2501 = vmatpush.msra.mxu0 %v2467
      %2502 = vmatpush.msra.mxu0 %v2466
      %2503 = vmatpush.msra.mxu0 %v2465
      %2504 = vmatpush.msra.mxu0 %v2464
      %2505 = vmatpush.msra.mxu0 %v2463
      %2506 = vmatpush.msra.mxu0 %v2462
      %2507 = vmatpush.msra.mxu0 %v2461
      %2508 = vmatpush.msra.mxu0 %v2460
      %2509 = vmatpush.msra.mxu0 %v2459
      %2510 = vmatpush.msra.mxu0 %v2458
      %2511 = vmatmul.f32.gmra.mxu0 %v2440
      %v2512 = vpop.f32.mrf.mxu0
      %v2513 = vadd.f32 %v2493, %v2512
      %2514 = vdwg.mxu0
      %v2515 = vmax.f32 %v2513, 0.0
      %v2516 = vld [vmem:[#allocation8 + $0x108] sm:$0xff]
      %v2517 = vld [vmem:[#allocation8 + $0x118] sm:$0xff]
      %v2518 = vld [vmem:[#allocation8 + $0x128] sm:$0xff]
      %v2519 = vld [vmem:[#allocation8 + $0x138] sm:$0xff]
      %v2520 = vld [vmem:[#allocation8 + $0x148] sm:$0xff]
      %v2521 = vld [vmem:[#allocation8 + $0x158] sm:$0xff]
      %v2522 = vld [vmem:[#allocation8 + $0x168] sm:$0xff]
      %v2523 = vld [vmem:[#allocation8 + $0x178] sm:$0xff]
      %v2524 = vld [vmem:[#allocation8 + $0x188] sm:$0xff]
      %v2525 = vld [vmem:[#allocation8 + $0x198] sm:$0xff]
      %v2526 = vld [vmem:[#allocation8 + $0x1a8] sm:$0xff]
      %v2527 = vld [vmem:[#allocation8 + $0x1b8] sm:$0xff]
      %v2528 = vld [vmem:[#allocation8 + $0x1c8] sm:$0xff]
      %v2529 = vld [vmem:[#allocation8 + $0x1d8] sm:$0xff]
      %v2530 = vld [vmem:[#allocation8 + $0x1e8] sm:$0xff]
      %v2531 = vld [vmem:[#allocation8 + $0x1f8] sm:$0xff]
      %v2532 = vperm.slane %v2361, 3
      %2533 = vmatpush.msra.mxu0 %v2531
      %2534 = vmatpush.msra.mxu0 %v2530
      %2535 = vmatpush.msra.mxu0 %v2529
      %2536 = vmatpush.msra.mxu0 %v2528
      %2537 = vmatpush.msra.mxu0 %v2527
      %2538 = vmatpush.msra.mxu0 %v2526
      %2539 = vmatpush.msra.mxu0 %v2525
      %2540 = vmatpush.msra.mxu0 %v2524
      %2541 = vmatpush.msra.mxu0 %v2523
      %2542 = vmatpush.msra.mxu0 %v2522
      %2543 = vmatpush.msra.mxu0 %v2521
      %2544 = vmatpush.msra.mxu0 %v2520
      %2545 = vmatpush.msra.mxu0 %v2519
      %2546 = vmatpush.msra.mxu0 %v2518
      %2547 = vmatpush.msra.mxu0 %v2517
      %2548 = vmatpush.msra.mxu0 %v2516
      %2549 = vmatmul.f32.gmra.mxu0 %v2515
      %v2550 = vpop.f32.mrf.mxu0
      %v2551 = vadd.f32 %v2532, %v2550
      %2552 = vdwg.mxu0
      %2553 = vst [vmem:[#allocation10] sm:$0x3] %v2551
    $region33: #{cnn_expert1_forward.1} parent=1 // pred_fallthru
      _
    // Predicated region
    $region34: #{cnn_expert1_forward.1} parent=1 // pred_check
      _
    $region35: #{cnn_expert1_forward.1} parent=1 // pred_check_branch
      %2555 = sbr.rel (0) target = $region37
    $region36: #{cnn_expert1_forward.1} parent=1 // pred_region
      %2557 = vsyncadd [#allocation5], 0
      %s2559 = sshll.u32 [#allocation9], 4
      %s2560 = int_to_ptr.vmem [resolvable:$true] %s2559
      %s2561 = sshll.u32 %s3, 4
      %s2562 = int_to_ptr.hbm [resolvable:$true] %s2561
      %2564 = dma.vmem_to_hbm [thread:$0]  %s2560, 32, %s2562, [#allocation5]
    $region37: #{cnn_expert1_forward.1} parent=1 // pred_fallthru
      _
    // Predicated region
    $region38: #{cnn_expert1_forward.1} parent=1 // pred_check
      _
    $region39: #{cnn_expert1_forward.1} parent=1 // pred_check_branch
      %2566 = sbr.rel (0) target = $region41
    $region40: #{cnn_expert1_forward.1} parent=1 // pred_region
      %2568 = vsyncadd [#allocation11], 0
      %s2570 = sshll.u32 [#allocation10], 4
      %s2571 = int_to_ptr.vmem [resolvable:$true] %s2570
      %s2572 = sshll.u32 %s4, 4
      %s2573 = int_to_ptr.hbm [resolvable:$true] %s2572
      %2575 = dma.vmem_to_hbm [thread:$0]  %s2571, 32, %s2573, [#allocation11]
    $region41: #{cnn_expert1_forward.1} parent=1 // pred_fallthru
      _
    // Predicated region
    $region42: #{cnn_expert1_forward.1} parent=1 // pred_check
      _
    $region43: #{cnn_expert1_forward.1} parent=1 // pred_check_branch
      %2577 = sbr.rel (0) target = $region45
    $region44: #{cnn_expert1_forward.1} parent=1 // pred_region
      %2579 = dma.done [#allocation5], 32
    $region45: #{cnn_expert1_forward.1} parent=1 // pred_fallthru
      _
    // Predicated region
    $region46: #{cnn_expert1_forward.1} parent=1 // pred_check
      _
    $region47: #{cnn_expert1_forward.1} parent=1 // pred_check_branch
      %2581 = sbr.rel (0) target = $region49
    $region48: #{cnn_expert1_forward.1} parent=1 // pred_region
      %2583 = dma.done [#allocation11], 32
    $region49: #{cnn_expert1_forward.1} parent=1 // pred_fallthru
      _
    %2584 = vsyncpa [#allocation4], 1
    %2585 = vsyncpa [#allocation7], 1
    %2586 = vsyncpa [#allocation5], 1
    %2587 = vsyncpa [#allocation11], 1

</llo_original>
